<compile_context>
chip_gen: v5e
topology: v5e:2x2
jax: 0.10.0
libtpu: 0.0.40
codegen_flags: <defaults>
</compile_context>

<pallas_src>
import jax
import jax.numpy as jnp
from jax.experimental import pallas as pl
from jax.experimental.pallas import tpu as pltpu


# ----------------------------------------------------------------------------
# Pallas kernel
# ----------------------------------------------------------------------------
def make_composition_kernel(num_parts):
    P = num_parts

    def kernel(*refs):
        xh_ref = refs[0]                         # (h, T)   f32
        xp_refs = refs[1:1 + P]                  # P x (h, T) f32
        (att_ref,                                # (1, T)   f32 (summed attention)
         w1h_ref,                                # (2h, h)  bf16 (BN1 scale folded)
         w1p_ref,                                # (2h, h)  bf16 (BN1 scale folded)
         b1_ref,                                 # (2h, 1)  f32
         w2_ref,                                 # (h, 2h)  bf16 (BN2 scale folded)
         b2_ref,                                 # (h, 1)   f32
         o_ref) = refs[1 + P:]                   # (h, T)   f32

        T = xh_ref.shape[-1]

        att = att_ref[...]                                   # (1, T)
        xh_bf = xh_ref[...].astype(jnp.bfloat16)              # (h, T)

        w1h = w1h_ref[...]
        w1p = w1p_ref[...]
        w2 = w2_ref[...]
        b1 = b1_ref[...]
        b2 = b2_ref[...]

        # xh contribution to the first 1x1 conv is identical for every part:
        # compute it once per spatial tile.
        zh1 = jnp.dot(w1h, xh_bf, preferred_element_type=jnp.float32)   # (2h, T)

        # Merge all parts along the lane axis -> one large-free-dim matmul per
        # conv instead of P tiny ones (amortizes MXU weight push/drain).
        xp_cat = jnp.concatenate(
            [(r[...] * att).astype(jnp.bfloat16) for r in xp_refs],
            axis=-1)                                                     # (h, P*T)

        z1 = jnp.dot(w1p, xp_cat, preferred_element_type=jnp.float32)   # (2h, P*T)
        z1 = z1 + jnp.concatenate([zh1] * P, axis=-1) + b1
        z1 = jnp.maximum(z1, 0.0).astype(jnp.bfloat16)

        z2 = jnp.dot(w2, z1, preferred_element_type=jnp.float32)        # (h, P*T)
        z2 = jnp.maximum(z2 + b2, 0.0)

        # Sum over parts with lane-aligned static slices (T is a multiple of
        # 128); accumulator initialized with part 0 (no zeros materialization).
        acc = z2[:, 0:T]
        for p in range(1, P):
            acc = acc + z2[:, p * T:(p + 1) * T]

        o_ref[...] = acc.astype(o_ref.dtype)

    return kernel


def _pick_spatial_tile(hw, h, num_parts):
    """Largest lane-dense (multiple-of-128) spatial tile that fits VMEM."""
    budget = 12 << 20   # conservative vs v5e's 16 MiB default scoped VMEM

    def fits(t):
        # double-buffered f32 blocks: xh + P*xp + out + att
        per_step = (num_parts + 2) * h * t * 4 + t * 4
        return 2 * per_step <= budget

    for t in (2048, 1024, 512, 384, 256, 128):
        if hw % t == 0 and fits(t):
            return t
    if hw < 128:
        return hw   # full-extent block (exempt from the (8,128) rule)
    # Non-128-divisible HW: cdiv grid + padded tail (OOB writes are dropped;
    # padded columns only affect padded outputs since all ops are per-column).
    hw128 = ((hw + 127) // 128) * 128
    for t in (2048, 1024, 512, 256, 128):
        if t <= hw128 and fits(t):
            return t
    return 128


def composition_pallas(xh, xp_parts, att, w1h, w1p, b1, w2, b2):
    """xh:(N,h,HW)  xp_parts: list of P (N,h,HW)  att:(N,1,HW) -> (N,h,HW)."""
    N, h, HW = xh.shape
    P = len(xp_parts)
    h2 = 2 * h
    t_m = _pick_spatial_tile(HW, h, P)
    grid = (N, pl.cdiv(HW, t_m))

    spatial = lambda n, j: (n, 0, j)
    const = lambda n, j: (0, 0)   # full-tensor params, same block every step

    in_specs = (
        [pl.BlockSpec((None, h, t_m), spatial)]                          # xh
        + [pl.BlockSpec((None, h, t_m), spatial) for _ in range(P)]      # xp_p
        + [
            pl.BlockSpec((None, 1, t_m), spatial),                       # att
            pl.BlockSpec((h2, h), const),                                # w1h
            pl.BlockSpec((h2, h), const),                                # w1p
            pl.BlockSpec((h2, 1), const),                                # b1
            pl.BlockSpec((h, h2), const),                                # w2
            pl.BlockSpec((h, 1), const),                                 # b2
        ]
    )

    return pl.pallas_call(
        make_composition_kernel(P),
        out_shape=jax.ShapeDtypeStruct((N, h, HW), xh.dtype),
        grid_spec=pltpu.PrefetchScalarGridSpec(
            num_scalar_prefetch=0,
            grid=grid,
            in_specs=in_specs,
            out_specs=pl.BlockSpec((None, h, t_m), spatial),
        ),
        compiler_params=pltpu.CompilerParams(
            dimension_semantics=("parallel", "parallel"),
        ),
    )(xh, *xp_parts, att, w1h, w1p, b1, w2, b2)


# ----------------------------------------------------------------------------
# Module wrapper (parameter setup + NCHW <-> (N,C,HW) glue — reshapes only)
# ----------------------------------------------------------------------------
class CompositionPallas:
    def __init__(self, hidden_dim, key):
        h = hidden_dim
        h2 = 2 * h
        keys = jax.random.split(key, 10)
        eps = 1e-5

        # Conv weights in PyTorch (out, in) layout — exactly what the
        # channels-in-sublanes kernel consumes (y = W @ x).
        w1_oi = jax.random.normal(keys[0], (h2, h2), jnp.float32) * 0.05
        w2_oi = jax.random.normal(keys[1], (h, h2), jnp.float32) * 0.05

        # BN params (InPlaceABNSync, activation='none' -> plain BN), folded
        # into per-output-channel scale/bias column vectors.
        def fold_bn(kg, kb, km, kv, c):
            gamma = 1.0 + 0.1 * jax.random.normal(kg, (c,), jnp.float32)
            beta = 0.1 * jax.random.normal(kb, (c,), jnp.float32)
            mean = 0.1 * jax.random.normal(km, (c,), jnp.float32)
            var = jax.nn.softplus(jax.random.normal(kv, (c,), jnp.float32)) + 0.5
            scale = gamma / jnp.sqrt(var + eps)
            bias = beta - mean * scale
            return scale.reshape(c, 1), bias.reshape(c, 1)

        s1, b1 = fold_bn(keys[2], keys[3], keys[4], keys[5], h2)
        s2, b2 = fold_bn(keys[6], keys[7], keys[8], keys[9], h)

        # Fold BN scale into conv weights in f32, then cast to bf16 for MXU.
        # First conv split into columns acting on xh vs xp*att so the xh half
        # can be computed once per tile.
        self.w1h = (s1 * w1_oi[:, :h]).astype(jnp.bfloat16)
        self.w1p = (s1 * w1_oi[:, h:]).astype(jnp.bfloat16)
        self.w2 = (s2 * w2_oi).astype(jnp.bfloat16)
        self.b1 = b1
        self.b2 = b2
        self.hidden_dim = h

    def __call__(self, xh, xp_list, xp_att_list):
        # xh: (N,h,H,W); xp_list: list of (N,h,H,W); xp_att_list: list of (N,1,H,W)
        N, h, H, W = xh.shape
        HW = H * W

        com_att = sum(xp_att_list)                        # (N,1,H,W)
        att = com_att.reshape(N, 1, HW)
        xh_f = xh.reshape(N, h, HW)
        # Reshape-only views: NO stacking copy of the dominant xp traffic.
        xp_parts = [xp.reshape(N, h, HW) for xp in xp_list]

        out = composition_pallas(
            xh_f, xp_parts, att,
            self.w1h, self.w1p, self.b1, self.w2, self.b2,
        )                                                 # (N, h, HW)
        return out.reshape(N, h, H, W)

    # Pure-JAX reference mirroring the same folded-BN / bf16-matmul math.
    def reference(self, xh, xp_list, xp_att_list):
        N, h, H, W = xh.shape
        HW = H * W
        com_att = sum(xp_att_list).reshape(N, 1, HW)
        xh_bf = xh.reshape(N, h, HW).astype(jnp.bfloat16)
        zh1 = jnp.einsum("oc,nct->not", self.w1h, xh_bf,
                         preferred_element_type=jnp.float32)
        out = jnp.zeros((N, h, HW), jnp.float32)
        for xp in xp_list:
            xp_bf = (xp.reshape(N, h, HW) * com_att).astype(jnp.bfloat16)
            z1 = jnp.einsum("oc,nct->not", self.w1p, xp_bf,
                            preferred_element_type=jnp.float32) + zh1 + self.b1[None]
            z1 = jnp.maximum(z1, 0.0).astype(jnp.bfloat16)
            z2 = jnp.einsum("oc,nct->not", self.w2, z1,
                            preferred_element_type=jnp.float32)
            z2 = jnp.maximum(z2 + self.b2[None], 0.0)
            out = out + z2
        return out.reshape(N, h, H, W)


# ----------------------------------------------------------------------------
if __name__ == "__main__":
    key = jax.random.PRNGKey(0)
    k_mod, k_xh, k_xp, k_att = jax.random.split(key, 4)

    N, hidden, H, W = 2, 32, 16, 16
    P = 3  # number of parts in xp_list / xp_att_list

    module = CompositionPallas(hidden, k_mod)

    xh = jax.random.normal(k_xh, (N, hidden, H, W), jnp.float32)
    xp_keys = jax.random.split(k_xp, P)
    att_keys = jax.random.split(k_att, P)
    xp_list = [jax.random.normal(k, (N, hidden, H, W), jnp.float32) for k in xp_keys]
    xp_att_list = [jax.nn.sigmoid(jax.random.normal(k, (N, 1, H, W), jnp.float32))
                   for k in att_keys]

    out = jax.block_until_ready(module(xh, xp_list, xp_att_list))
    ref = jax.block_until_ready(module.reference(xh, xp_list, xp_att_list))

    assert out.shape == (N, hidden, H, W)
    err = jnp.max(jnp.abs(out - ref))
    assert jnp.allclose(out, ref, atol=2e-3, rtol=2e-3), f"mismatch vs reference: {err}"

    print("KERNEL_OK")
</pallas_src>

<mosaic_0001>
module attributes {stable_mosaic.version = 11 : i64} {
  func.func @kernel(%arg0: i32, %arg1: i32, %arg2: memref<1x32x256xf32, #tpu.memory_space<vmem>>, %arg3: memref<1x32x256xf32, #tpu.memory_space<vmem>>, %arg4: memref<1x32x256xf32, #tpu.memory_space<vmem>>, %arg5: memref<1x32x256xf32, #tpu.memory_space<vmem>>, %arg6: memref<1x1x256xf32, #tpu.memory_space<vmem>>, %arg7: memref<64x32xbf16, #tpu.memory_space<vmem>>, %arg8: memref<64x32xbf16, #tpu.memory_space<vmem>>, %arg9: memref<64x1xf32, #tpu.memory_space<vmem>>, %arg10: memref<32x64xbf16, #tpu.memory_space<vmem>>, %arg11: memref<32x1xf32, #tpu.memory_space<vmem>>, %arg12: memref<1x32x256xf32, #tpu.memory_space<vmem>>) attributes {dimension_semantics = [#tpu.dimension_semantics<parallel>, #tpu.dimension_semantics<parallel>], iteration_bounds = array<i64: 2, 1>, scalar_prefetch = 0 : i64, scratch_operands = 0 : i64, tpu.core_type = #tpu.core_type<tc>, window_params = [{transform_indices = @transform_0, window_bounds = array<i64: 1, 32, 256>}, {transform_indices = @transform_1, window_bounds = array<i64: 1, 32, 256>}, {transform_indices = @transform_2, window_bounds = array<i64: 1, 32, 256>}, {transform_indices = @transform_3, window_bounds = array<i64: 1, 32, 256>}, {transform_indices = @transform_4, window_bounds = array<i64: 1, 1, 256>}, {pipeline_mode = #tpu.pipeline_mode<synchronous>, transform_indices = @transform_5, window_bounds = array<i64: 64, 32>}, {pipeline_mode = #tpu.pipeline_mode<synchronous>, transform_indices = @transform_6, window_bounds = array<i64: 64, 32>}, {pipeline_mode = #tpu.pipeline_mode<synchronous>, transform_indices = @transform_7, window_bounds = array<i64: 64, 1>}, {pipeline_mode = #tpu.pipeline_mode<synchronous>, transform_indices = @transform_8, window_bounds = array<i64: 32, 64>}, {pipeline_mode = #tpu.pipeline_mode<synchronous>, transform_indices = @transform_9, window_bounds = array<i64: 32, 1>}, {transform_indices = @transform_10, window_bounds = array<i64: 1, 32, 256>}]} {
    %c0 = arith.constant 0 : index
    %c0_0 = arith.constant 0 : index
    %c0_1 = arith.constant 0 : index
    %0 = vector.load %arg6[%c0, %c0_0, %c0_1] : memref<1x1x256xf32, #tpu.memory_space<vmem>>, vector<1x1x256xf32>
    %1 = vector.shape_cast %0 : vector<1x1x256xf32> to vector<1x256xf32>
    %c0_2 = arith.constant 0 : index
    %c0_3 = arith.constant 0 : index
    %c0_4 = arith.constant 0 : index
    %2 = vector.load %arg2[%c0_2, %c0_3, %c0_4] : memref<1x32x256xf32, #tpu.memory_space<vmem>>, vector<1x32x256xf32>
    %3 = vector.shape_cast %2 : vector<1x32x256xf32> to vector<32x256xf32>
    %4 = arith.truncf %3 : vector<32x256xf32> to vector<32x256xbf16>
    %c0_5 = arith.constant 0 : index
    %c0_6 = arith.constant 0 : index
    %5 = vector.load %arg7[%c0_5, %c0_6] : memref<64x32xbf16, #tpu.memory_space<vmem>>, vector<64x32xbf16>
    %c0_7 = arith.constant 0 : index
    %c0_8 = arith.constant 0 : index
    %6 = vector.load %arg8[%c0_7, %c0_8] : memref<64x32xbf16, #tpu.memory_space<vmem>>, vector<64x32xbf16>
    %c0_9 = arith.constant 0 : index
    %c0_10 = arith.constant 0 : index
    %7 = vector.load %arg10[%c0_9, %c0_10] : memref<32x64xbf16, #tpu.memory_space<vmem>>, vector<32x64xbf16>
    %c0_11 = arith.constant 0 : index
    %c0_12 = arith.constant 0 : index
    %8 = vector.load %arg9[%c0_11, %c0_12] : memref<64x1xf32, #tpu.memory_space<vmem>>, vector<64x1xf32>
    %c0_13 = arith.constant 0 : index
    %c0_14 = arith.constant 0 : index
    %9 = vector.load %arg11[%c0_13, %c0_14] : memref<32x1xf32, #tpu.memory_space<vmem>>, vector<32x1xf32>
    %cst = arith.constant dense<0.000000e+00> : vector<64x256xf32>
    %10 = tpu.matmul %5, %4, %cst {dimension_numbers = #tpu.dot_dimension_numbers<[1], [0], [0], [1], [0, 0, 1, 1], [], []>} : vector<64x32xbf16>, vector<32x256xbf16>, vector<64x256xf32> -> vector<64x256xf32>
    %c0_15 = arith.constant 0 : index
    %c0_16 = arith.constant 0 : index
    %c0_17 = arith.constant 0 : index
    %11 = vector.load %arg3[%c0_15, %c0_16, %c0_17] : memref<1x32x256xf32, #tpu.memory_space<vmem>>, vector<1x32x256xf32>
    %12 = vector.shape_cast %11 : vector<1x32x256xf32> to vector<32x256xf32>
    %13 = vector.broadcast %1 : vector<1x256xf32> to vector<32x256xf32>
    %14 = arith.mulf %12, %13 : vector<32x256xf32>
    %15 = arith.truncf %14 : vector<32x256xf32> to vector<32x256xbf16>
    %c0_18 = arith.constant 0 : index
    %c0_19 = arith.constant 0 : index
    %c0_20 = arith.constant 0 : index
    %16 = vector.load %arg4[%c0_18, %c0_19, %c0_20] : memref<1x32x256xf32, #tpu.memory_space<vmem>>, vector<1x32x256xf32>
    %17 = vector.shape_cast %16 : vector<1x32x256xf32> to vector<32x256xf32>
    %18 = vector.broadcast %1 : vector<1x256xf32> to vector<32x256xf32>
    %19 = arith.mulf %17, %18 : vector<32x256xf32>
    %20 = arith.truncf %19 : vector<32x256xf32> to vector<32x256xbf16>
    %c0_21 = arith.constant 0 : index
    %c0_22 = arith.constant 0 : index
    %c0_23 = arith.constant 0 : index
    %21 = vector.load %arg5[%c0_21, %c0_22, %c0_23] : memref<1x32x256xf32, #tpu.memory_space<vmem>>, vector<1x32x256xf32>
    %22 = vector.shape_cast %21 : vector<1x32x256xf32> to vector<32x256xf32>
    %23 = vector.broadcast %1 : vector<1x256xf32> to vector<32x256xf32>
    %24 = arith.mulf %22, %23 : vector<32x256xf32>
    %25 = arith.truncf %24 : vector<32x256xf32> to vector<32x256xbf16>
    %26 = tpu.concatenate %15, %20, %25 in 1 : vector<32x256xbf16>, vector<32x256xbf16>, vector<32x256xbf16> -> vector<32x768xbf16>
    %cst_24 = arith.constant dense<0.000000e+00> : vector<64x768xf32>
    %27 = tpu.matmul %6, %26, %cst_24 {dimension_numbers = #tpu.dot_dimension_numbers<[1], [0], [0], [1], [0, 0, 1, 1], [], []>} : vector<64x32xbf16>, vector<32x768xbf16>, vector<64x768xf32> -> vector<64x768xf32>
    %28 = tpu.concatenate %10, %10, %10 in 1 : vector<64x256xf32>, vector<64x256xf32>, vector<64x256xf32> -> vector<64x768xf32>
    %29 = arith.addf %27, %28 : vector<64x768xf32>
    %30 = vector.broadcast %8 : vector<64x1xf32> to vector<64x768xf32>
    %31 = arith.addf %29, %30 : vector<64x768xf32>
    %cst_25 = arith.constant 0.000000e+00 : f32
    %32 = vector.broadcast %cst_25 : f32 to vector<64x768xf32>
    %33 = arith.maximumf %31, %32 : vector<64x768xf32>
    %34 = arith.truncf %33 : vector<64x768xf32> to vector<64x768xbf16>
    %cst_26 = arith.constant dense<0.000000e+00> : vector<32x768xf32>
    %35 = tpu.matmul %7, %34, %cst_26 {dimension_numbers = #tpu.dot_dimension_numbers<[1], [0], [0], [1], [0, 0, 1, 1], [], []>} : vector<32x64xbf16>, vector<64x768xbf16>, vector<32x768xf32> -> vector<32x768xf32>
    %36 = vector.broadcast %9 : vector<32x1xf32> to vector<32x768xf32>
    %37 = arith.addf %35, %36 : vector<32x768xf32>
    %cst_27 = arith.constant 0.000000e+00 : f32
    %38 = vector.broadcast %cst_27 : f32 to vector<32x768xf32>
    %39 = arith.maximumf %37, %38 : vector<32x768xf32>
    %40 = vector.extract_strided_slice %39 {offsets = [0, 0], sizes = [32, 256], strides = [1, 1]} : vector<32x768xf32> to vector<32x256xf32>
    %41 = vector.extract_strided_slice %39 {offsets = [0, 256], sizes = [32, 256], strides = [1, 1]} : vector<32x768xf32> to vector<32x256xf32>
    %42 = arith.addf %40, %41 : vector<32x256xf32>
    %43 = vector.extract_strided_slice %39 {offsets = [0, 512], sizes = [32, 256], strides = [1, 1]} : vector<32x768xf32> to vector<32x256xf32>
    %44 = arith.addf %42, %43 : vector<32x256xf32>
    %c0_28 = arith.constant 0 : index
    %c0_29 = arith.constant 0 : index
    %c0_30 = arith.constant 0 : index
    %45 = vector.load %arg12[%c0_28, %c0_29, %c0_30] : memref<1x32x256xf32, #tpu.memory_space<vmem>>, vector<1x32x256xf32>
    %46 = vector.shape_cast %45 : vector<1x32x256xf32> to vector<32x256xf32>
    %47 = vector.shape_cast %44 : vector<32x256xf32> to vector<1x32x256xf32>
    tpu.vector_store %arg12[%c0_28, %c0_29, %c0_30], %47 {strides = array<i32>} : memref<1x32x256xf32, #tpu.memory_space<vmem>>, vector<1x32x256xf32>,
    return
  }
  func.func @transform_0(%arg0: i32, %arg1: i32) -> (i32, i32, i32) {
    %c0_i32 = arith.constant 0 : i32
    %c0_i32_0 = arith.constant 0 : i32
    return %arg0, %c0_i32, %arg1 : i32, i32, i32
  }
  func.func @transform_1(%arg0: i32, %arg1: i32) -> (i32, i32, i32) {
    %c0_i32 = arith.constant 0 : i32
    %c0_i32_0 = arith.constant 0 : i32
    return %arg0, %c0_i32, %arg1 : i32, i32, i32
  }
  func.func @transform_2(%arg0: i32, %arg1: i32) -> (i32, i32, i32) {
    %c0_i32 = arith.constant 0 : i32
    %c0_i32_0 = arith.constant 0 : i32
    return %arg0, %c0_i32, %arg1 : i32, i32, i32
  }
  func.func @transform_3(%arg0: i32, %arg1: i32) -> (i32, i32, i32) {
    %c0_i32 = arith.constant 0 : i32
    %c0_i32_0 = arith.constant 0 : i32
    return %arg0, %c0_i32, %arg1 : i32, i32, i32
  }
  func.func @transform_4(%arg0: i32, %arg1: i32) -> (i32, i32, i32) {
    %c0_i32 = arith.constant 0 : i32
    %c0_i32_0 = arith.constant 0 : i32
    return %arg0, %c0_i32, %arg1 : i32, i32, i32
  }
  func.func @transform_5(%arg0: i32, %arg1: i32) -> (i32, i32) {
    %c0_i32 = arith.constant 0 : i32
    %c0_i32_0 = arith.constant 0 : i32
    %c0_i32_1 = arith.constant 0 : i32
    return %c0_i32, %c0_i32_0 : i32, i32
  }
  func.func @transform_6(%arg0: i32, %arg1: i32) -> (i32, i32) {
    %c0_i32 = arith.constant 0 : i32
    %c0_i32_0 = arith.constant 0 : i32
    %c0_i32_1 = arith.constant 0 : i32
    return %c0_i32, %c0_i32_0 : i32, i32
  }
  func.func @transform_7(%arg0: i32, %arg1: i32) -> (i32, i32) {
    %c0_i32 = arith.constant 0 : i32
    %c0_i32_0 = arith.constant 0 : i32
    %c0_i32_1 = arith.constant 0 : i32
    return %c0_i32, %c0_i32_0 : i32, i32
  }
  func.func @transform_8(%arg0: i32, %arg1: i32) -> (i32, i32) {
    %c0_i32 = arith.constant 0 : i32
    %c0_i32_0 = arith.constant 0 : i32
    %c0_i32_1 = arith.constant 0 : i32
    return %c0_i32, %c0_i32_0 : i32, i32
  }
  func.func @transform_9(%arg0: i32, %arg1: i32) -> (i32, i32) {
    %c0_i32 = arith.constant 0 : i32
    %c0_i32_0 = arith.constant 0 : i32
    %c0_i32_1 = arith.constant 0 : i32
    return %c0_i32, %c0_i32_0 : i32, i32
  }
  func.func @transform_10(%arg0: i32, %arg1: i32) -> (i32, i32, i32) {
    %c0_i32 = arith.constant 0 : i32
    %c0_i32_0 = arith.constant 0 : i32
    return %arg0, %c0_i32, %arg1 : i32, i32, i32
  }
}

</mosaic_0001>

<llo_original>
// kernel: tpu_custom_call.1
$region0: #{tpu_custom_call.1}
  #allocation0 [shape = 'u32[]', space=smem, size = 0x4, offset = 0x4, fixed_abs, tag = 'smem constant byte address 0x4 - core index']
  #allocation1 [shape = 'u32[72,128]{1,0:T(1,128)}', space=vmem, size = 0x9000, scoped, tag = 'internal scratch']
  %s0 = inlined_call_operand.hbm [shape: f32[2,32,256], index: 0, kind: input, shape index: {}]
  %s1 = inlined_call_operand.hbm [shape: f32[2,32,256], index: 1, kind: input, shape index: {}]
  %s2 = inlined_call_operand.hbm [shape: f32[2,32,256], index: 2, kind: input, shape index: {}]
  %s3 = inlined_call_operand.hbm [shape: f32[2,32,256], index: 3, kind: input, shape index: {}]
  %s4 = inlined_call_operand.vmem [shape: f32[2,1,256], index: 4, kind: input, shape index: {}]
  %s5 = inlined_call_operand.vmem [shape: bf16[64,32], index: 5, kind: input, shape index: {}]
  %s6 = inlined_call_operand.vmem [shape: bf16[64,32], index: 6, kind: input, shape index: {}]
  %s7 = inlined_call_operand.vmem [shape: f32[64,1], index: 7, kind: input, shape index: {}]
  %s8 = inlined_call_operand.vmem [shape: bf16[32,64], index: 8, kind: input, shape index: {}]
  %s9 = inlined_call_operand.vmem [shape: f32[32,1], index: 9, kind: input, shape index: {}]
  %s10 = inlined_call_operand.hbm [shape: f32[2,32,256], index: 10, kind: output, shape index: {}]
  %s11 = sld [smem:[#allocation0]]
  $region89: #{tpu_custom_call.1} parent=0
    _
  %s13 = ssub.s32 1, %s11
  %s14 = scalar_select 0, %s13, %s11
  $region1: #{tpu_custom_call.1} parent=0
    #allocation2 [shape = 'u8[65536]{0}', space=vmem, size = 0x10000, scoped, tag = 'input window, operand 0']
    #allocation3 [shape = 's32[2]{0}', space=sflag, size = 0x8, scoped, tag = 'scoped memory for tpu_custom_call.1']
    #allocation4 [shape = 's32[2]{0}', space=sflag, size = 0x8, scoped, tag = 'scoped memory for tpu_custom_call.1']
    #allocation5 [shape = 'u8[65536]{0}', space=vmem, size = 0x10000, scoped, tag = 'input window, operand 1']
    #allocation6 [shape = 's32[2]{0}', space=sflag, size = 0x8, scoped, tag = 'scoped memory for tpu_custom_call.1']
    #allocation7 [shape = 'u8[65536]{0}', space=vmem, size = 0x10000, scoped, tag = 'input window, operand 2']
    #allocation8 [shape = 'u8[65536]{0}', space=vmem, size = 0x10000, scoped, tag = 'input window, operand 3']
    #allocation9 [shape = 's32[2]{0}', space=sflag, size = 0x8, scoped, tag = 'scoped memory for tpu_custom_call.1']
    #allocation10 [shape = 'u8[65536]{0}', space=vmem, size = 0x10000, scoped, tag = 'output window, operand 0']
    %15 = vsyncpa [#allocation3], 0
    %s16 = scalar_lea.sflag [#allocation3], 1
    %17 = vsyncpa %s16, 0
    %18 = vsyncpa [#allocation6], 0
    %s19 = scalar_lea.sflag [#allocation6], 1
    %20 = vsyncpa %s19, 0
    %21 = vsyncpa [#allocation9], 0
    %s22 = scalar_lea.sflag [#allocation9], 1
    %23 = vsyncpa %s22, 0
    %24 = vsyncpa [#allocation4], 0
    %s25 = scalar_lea.sflag [#allocation4], 1
    %26 = vsyncpa %s25, 0
    loop: start=0, step=1, limit=4
    $region2: #{tpu_custom_call.1} parent=1 // loop_pre_header
      _
    $region3: #{tpu_custom_call.1} parent=1 // loop_header
      %s28 = sphi 0, %s32
      %p29 = scmp.ge.s32.totalorder %s28, 4
      %s35 = sphi 0, %s47
      %s36 = sphi 0, %s43
      %s37 = sphi 0, %s35
      %s38 = sphi 0, %s36
      %s39 = sphi 0, %s37
      %s40 = sphi 0, %s38
      %s52 = sphi 0, %s54
      %s55 = sphi 0, %s52
      %s56 = sphi 0, %s55
      %s72 = sphi 0, %s56
      %s80 = sphi 0, %s82
      %s83 = sphi 0, %s80
      %s84 = sphi 0, %s83
      %s100 = sphi 0, %s84
      %s108 = sphi 0, %s110
      %s111 = sphi 0, %s108
      %s112 = sphi 0, %s111
      %s128 = sphi 0, %s112
      %s136 = sphi 0, %s138
      %s139 = sphi 0, %s136
      %s140 = sphi 0, %s139
      %s156 = sphi 0, %s140
      %s164 = sphi 0, %s166
      %s167 = sphi 0, %s164
      %s168 = sphi 0, %s167
      %s184 = sphi 0, %s168
      %s188 = sphi 0, %s188
      %s190 = sphi 0, %s188
      %s191 = sphi 0, %s190
      %s205 = sphi 0, %s191
      %s209 = sphi 0, %s209
      %s211 = sphi 0, %s209
      %s212 = sphi 0, %s211
      %s226 = sphi 0, %s212
      %s230 = sphi 0, %s230
      %s232 = sphi 0, %s230
      %s233 = sphi 0, %s232
      %s247 = sphi 0, %s233
      %s251 = sphi 0, %s251
      %s253 = sphi 0, %s251
      %s254 = sphi 0, %s253
      %s268 = sphi 0, %s254
      %s272 = sphi 0, %s272
      %s274 = sphi 0, %s272
      %s275 = sphi 0, %s274
      %s289 = sphi 0, %s275
      %s297 = sphi 0, %s299
      %s300 = sphi 0, %s297
      %s301 = sphi 0, %s300
      %s317 = sphi 0, %s301
    $region4: #{tpu_custom_call.1} parent=1 // loop_header_branch
      %31 = sbr.rel (%p29) target = $region8
    $region5: #{tpu_custom_call.1} parent=1 // loop_body
      %s33 = ssub.s32 %s28, 1
      %s34 = ssub.s32 %s28, 2
      %s41 = sadd.s32 1, %s36
      %p42 = scmp.ge.s32.totalorder %s41, 1
      %s43 = scalar_select %p42, 0, %s41
      %s44 = sadd.s32 1, %s35
      %s45 = scalar_select %p42, %s44, %s35
      %p46 = scmp.ge.s32.totalorder %s45, 2
      %s47 = scalar_select %p46, 0, %s45
      %s48 = ssub.s32 %s35, %s47
      %s49 = ssub.s32 %s36, %s43
      %s50 = sor.u32 %s48, %s49
      %p51 = scmp.eq.s32.totalorder %s50, 0
      %s53 = sadd.s32 %s52, 1
      %s54 = scalar_select %p51, %s52, %s53
      %p57 = pneg %p51
      %p58 = scmp.eq.s32.totalorder %s28, 1
      %p59 = por %p57, %p58
      %p60 = scmp.ne.s32.totalorder %s52, %s55
      %p61 = scmp.eq.s32.totalorder %s28, 0
      %p62 = por %p60, %p61
      %p63 = scmp.ne.s32.totalorder %s52, %s55
      %p64 = scmp.eq.s32.totalorder %s33, 1
      %p65 = por %p63, %p64
      %p66 = scmp.ne.s32.totalorder %s55, %s56
      %p67 = scmp.eq.s32.totalorder %s33, 0
      %p68 = por %p66, %p67
      %p69 = scmp.ne.s32.totalorder %s55, %s56
      %p70 = scmp.eq.s32.totalorder %s34, 1
      %p71 = por %p69, %p70
      %p73 = scmp.ne.s32.totalorder %s56, %s72
      %p74 = scmp.eq.s32.totalorder %s34, 0
      %p75 = por %p73, %p74
      %s76 = ssub.s32 %s35, %s47
      %s77 = ssub.s32 %s36, %s43
      %s78 = sor.u32 %s76, %s77
      %p79 = scmp.eq.s32.totalorder %s78, 0
      %s81 = sadd.s32 %s80, 1
      %s82 = scalar_select %p79, %s80, %s81
      %p85 = pneg %p79
      %p86 = scmp.eq.s32.totalorder %s28, 1
      %p87 = por %p85, %p86
      %p88 = scmp.ne.s32.totalorder %s80, %s83
      %p89 = scmp.eq.s32.totalorder %s28, 0
      %p90 = por %p88, %p89
      %p91 = scmp.ne.s32.totalorder %s80, %s83
      %p92 = scmp.eq.s32.totalorder %s33, 1
      %p93 = por %p91, %p92
      %p94 = scmp.ne.s32.totalorder %s83, %s84
      %p95 = scmp.eq.s32.totalorder %s33, 0
      %p96 = por %p94, %p95
      %p97 = scmp.ne.s32.totalorder %s83, %s84
      %p98 = scmp.eq.s32.totalorder %s34, 1
      %p99 = por %p97, %p98
      %p101 = scmp.ne.s32.totalorder %s84, %s100
      %p102 = scmp.eq.s32.totalorder %s34, 0
      %p103 = por %p101, %p102
      %s104 = ssub.s32 %s35, %s47
      %s105 = ssub.s32 %s36, %s43
      %s106 = sor.u32 %s104, %s105
      %p107 = scmp.eq.s32.totalorder %s106, 0
      %s109 = sadd.s32 %s108, 1
      %s110 = scalar_select %p107, %s108, %s109
      %p113 = pneg %p107
      %p114 = scmp.eq.s32.totalorder %s28, 1
      %p115 = por %p113, %p114
      %p116 = scmp.ne.s32.totalorder %s108, %s111
      %p117 = scmp.eq.s32.totalorder %s28, 0
      %p118 = por %p116, %p117
      %p119 = scmp.ne.s32.totalorder %s108, %s111
      %p120 = scmp.eq.s32.totalorder %s33, 1
      %p121 = por %p119, %p120
      %p122 = scmp.ne.s32.totalorder %s111, %s112
      %p123 = scmp.eq.s32.totalorder %s33, 0
      %p124 = por %p122, %p123
      %p125 = scmp.ne.s32.totalorder %s111, %s112
      %p126 = scmp.eq.s32.totalorder %s34, 1
      %p127 = por %p125, %p126
      %p129 = scmp.ne.s32.totalorder %s112, %s128
      %p130 = scmp.eq.s32.totalorder %s34, 0
      %p131 = por %p129, %p130
      %s132 = ssub.s32 %s35, %s47
      %s133 = ssub.s32 %s36, %s43
      %s134 = sor.u32 %s132, %s133
      %p135 = scmp.eq.s32.totalorder %s134, 0
      %s137 = sadd.s32 %s136, 1
      %s138 = scalar_select %p135, %s136, %s137
      %p141 = pneg %p135
      %p142 = scmp.eq.s32.totalorder %s28, 1
      %p143 = por %p141, %p142
      %p144 = scmp.ne.s32.totalorder %s136, %s139
      %p145 = scmp.eq.s32.totalorder %s28, 0
      %p146 = por %p144, %p145
      %p147 = scmp.ne.s32.totalorder %s136, %s139
      %p148 = scmp.eq.s32.totalorder %s33, 1
      %p149 = por %p147, %p148
      %p150 = scmp.ne.s32.totalorder %s139, %s140
      %p151 = scmp.eq.s32.totalorder %s33, 0
      %p152 = por %p150, %p151
      %p153 = scmp.ne.s32.totalorder %s139, %s140
      %p154 = scmp.eq.s32.totalorder %s34, 1
      %p155 = por %p153, %p154
      %p157 = scmp.ne.s32.totalorder %s140, %s156
      %p158 = scmp.eq.s32.totalorder %s34, 0
      %p159 = por %p157, %p158
      %s160 = ssub.s32 %s35, %s47
      %s161 = ssub.s32 %s36, %s43
      %s162 = sor.u32 %s160, %s161
      %p163 = scmp.eq.s32.totalorder %s162, 0
      %s165 = sadd.s32 %s164, 1
      %s166 = scalar_select %p163, %s164, %s165
      %p169 = pneg %p163
      %p170 = scmp.eq.s32.totalorder %s28, 1
      %p171 = por %p169, %p170
      %p172 = scmp.ne.s32.totalorder %s164, %s167
      %p173 = scmp.eq.s32.totalorder %s28, 0
      %p174 = por %p172, %p173
      %p175 = scmp.ne.s32.totalorder %s164, %s167
      %p176 = scmp.eq.s32.totalorder %s33, 1
      %p177 = por %p175, %p176
      %p178 = scmp.ne.s32.totalorder %s167, %s168
      %p179 = scmp.eq.s32.totalorder %s33, 0
      %p180 = por %p178, %p179
      %p181 = scmp.ne.s32.totalorder %s167, %s168
      %p182 = scmp.eq.s32.totalorder %s34, 1
      %p183 = por %p181, %p182
      %p185 = scmp.ne.s32.totalorder %s168, %s184
      %p186 = scmp.eq.s32.totalorder %s34, 0
      %p187 = por %p185, %p186
      %s189 = sadd.s32 %s188, 1
      %p192 = scmp.eq.s32.totalorder %s28, 1
      %p193 = scmp.ne.s32.totalorder %s188, %s190
      %p194 = scmp.eq.s32.totalorder %s28, 0
      %p195 = por %p193, %p194
      %p196 = scmp.ne.s32.totalorder %s188, %s190
      %p197 = scmp.eq.s32.totalorder %s33, 1
      %p198 = por %p196, %p197
      %p199 = scmp.ne.s32.totalorder %s190, %s191
      %p200 = scmp.eq.s32.totalorder %s33, 0
      %p201 = por %p199, %p200
      %p202 = scmp.ne.s32.totalorder %s190, %s191
      %p203 = scmp.eq.s32.totalorder %s34, 1
      %p204 = por %p202, %p203
      %p206 = scmp.ne.s32.totalorder %s191, %s205
      %p207 = scmp.eq.s32.totalorder %s34, 0
      %p208 = por %p206, %p207
      %s210 = sadd.s32 %s209, 1
      %p213 = scmp.eq.s32.totalorder %s28, 1
      %p214 = scmp.ne.s32.totalorder %s209, %s211
      %p215 = scmp.eq.s32.totalorder %s28, 0
      %p216 = por %p214, %p215
      %p217 = scmp.ne.s32.totalorder %s209, %s211
      %p218 = scmp.eq.s32.totalorder %s33, 1
      %p219 = por %p217, %p218
      %p220 = scmp.ne.s32.totalorder %s211, %s212
      %p221 = scmp.eq.s32.totalorder %s33, 0
      %p222 = por %p220, %p221
      %p223 = scmp.ne.s32.totalorder %s211, %s212
      %p224 = scmp.eq.s32.totalorder %s34, 1
      %p225 = por %p223, %p224
      %p227 = scmp.ne.s32.totalorder %s212, %s226
      %p228 = scmp.eq.s32.totalorder %s34, 0
      %p229 = por %p227, %p228
      %s231 = sadd.s32 %s230, 1
      %p234 = scmp.eq.s32.totalorder %s28, 1
      %p235 = scmp.ne.s32.totalorder %s230, %s232
      %p236 = scmp.eq.s32.totalorder %s28, 0
      %p237 = por %p235, %p236
      %p238 = scmp.ne.s32.totalorder %s230, %s232
      %p239 = scmp.eq.s32.totalorder %s33, 1
      %p240 = por %p238, %p239
      %p241 = scmp.ne.s32.totalorder %s232, %s233
      %p242 = scmp.eq.s32.totalorder %s33, 0
      %p243 = por %p241, %p242
      %p244 = scmp.ne.s32.totalorder %s232, %s233
      %p245 = scmp.eq.s32.totalorder %s34, 1
      %p246 = por %p244, %p245
      %p248 = scmp.ne.s32.totalorder %s233, %s247
      %p249 = scmp.eq.s32.totalorder %s34, 0
      %p250 = por %p248, %p249
      %s252 = sadd.s32 %s251, 1
      %p255 = scmp.eq.s32.totalorder %s28, 1
      %p256 = scmp.ne.s32.totalorder %s251, %s253
      %p257 = scmp.eq.s32.totalorder %s28, 0
      %p258 = por %p256, %p257
      %p259 = scmp.ne.s32.totalorder %s251, %s253
      %p260 = scmp.eq.s32.totalorder %s33, 1
      %p261 = por %p259, %p260
      %p262 = scmp.ne.s32.totalorder %s253, %s254
      %p263 = scmp.eq.s32.totalorder %s33, 0
      %p264 = por %p262, %p263
      %p265 = scmp.ne.s32.totalorder %s253, %s254
      %p266 = scmp.eq.s32.totalorder %s34, 1
      %p267 = por %p265, %p266
      %p269 = scmp.ne.s32.totalorder %s254, %s268
      %p270 = scmp.eq.s32.totalorder %s34, 0
      %p271 = por %p269, %p270
      %s273 = sadd.s32 %s272, 1
      %p276 = scmp.eq.s32.totalorder %s28, 1
      %p277 = scmp.ne.s32.totalorder %s272, %s274
      %p278 = scmp.eq.s32.totalorder %s28, 0
      %p279 = por %p277, %p278
      %p280 = scmp.ne.s32.totalorder %s272, %s274
      %p281 = scmp.eq.s32.totalorder %s33, 1
      %p282 = por %p280, %p281
      %p283 = scmp.ne.s32.totalorder %s274, %s275
      %p284 = scmp.eq.s32.totalorder %s33, 0
      %p285 = por %p283, %p284
      %p286 = scmp.ne.s32.totalorder %s274, %s275
      %p287 = scmp.eq.s32.totalorder %s34, 1
      %p288 = por %p286, %p287
      %p290 = scmp.ne.s32.totalorder %s275, %s289
      %p291 = scmp.eq.s32.totalorder %s34, 0
      %p292 = por %p290, %p291
      %s293 = ssub.s32 %s35, %s47
      %s294 = ssub.s32 %s36, %s43
      %s295 = sor.u32 %s293, %s294
      %p296 = scmp.eq.s32.totalorder %s295, 0
      %s298 = sadd.s32 %s297, 1
      %s299 = scalar_select %p296, %s297, %s298
      %p302 = pneg %p296
      %p303 = scmp.eq.s32.totalorder %s28, 1
      %p304 = por %p302, %p303
      %p305 = scmp.ne.s32.totalorder %s297, %s300
      %p306 = scmp.eq.s32.totalorder %s28, 0
      %p307 = por %p305, %p306
      %p308 = scmp.ne.s32.totalorder %s297, %s300
      %p309 = scmp.eq.s32.totalorder %s33, 1
      %p310 = por %p308, %p309
      %p311 = scmp.ne.s32.totalorder %s300, %s301
      %p312 = scmp.eq.s32.totalorder %s33, 0
      %p313 = por %p311, %p312
      %p314 = scmp.ne.s32.totalorder %s300, %s301
      %p315 = scmp.eq.s32.totalorder %s34, 1
      %p316 = por %p314, %p315
      %p318 = scmp.ne.s32.totalorder %s301, %s317
      %p319 = scmp.eq.s32.totalorder %s34, 0
      %p320 = por %p318, %p319
      %p321 = scmp.le.s32.totalorder 1, %s28
      %p322 = scmp.lt.s32.totalorder %s28, 3
      %p323 = pnand %p321, %p322
      %p324 = pneg %p323
      // Predicated region
      $region9: #{tpu_custom_call.1} parent=5 // pred_check
        _
      $region10: #{tpu_custom_call.1} parent=5 // pred_check_branch
        %326 = sbr.rel (%p323) target = $region12
      $region11: #{tpu_custom_call.1} parent=5 // pred_region
        %s327 = ssub.s32 %s28, 1
        // Predicated region
        $region13: #{tpu_custom_call.1} parent=11 // pred_check
          %p328 = pneg %p201
        $region14: #{tpu_custom_call.1} parent=11 // pred_check_branch
          %330 = sbr.rel (%p328) target = $region16
        $region15: #{tpu_custom_call.1} parent=11 // pred_region
          _
        $region16: #{tpu_custom_call.1} parent=11 // pred_fallthru
          _
        // Predicated region
        $region17: #{tpu_custom_call.1} parent=11 // pred_check
          %p331 = pneg %p222
        $region18: #{tpu_custom_call.1} parent=11 // pred_check_branch
          %333 = sbr.rel (%p331) target = $region20
        $region19: #{tpu_custom_call.1} parent=11 // pred_region
          _
        $region20: #{tpu_custom_call.1} parent=11 // pred_fallthru
          _
        // Predicated region
        $region21: #{tpu_custom_call.1} parent=11 // pred_check
          %p334 = pneg %p243
        $region22: #{tpu_custom_call.1} parent=11 // pred_check_branch
          %336 = sbr.rel (%p334) target = $region24
        $region23: #{tpu_custom_call.1} parent=11 // pred_region
          _
        $region24: #{tpu_custom_call.1} parent=11 // pred_fallthru
          _
        // Predicated region
        $region25: #{tpu_custom_call.1} parent=11 // pred_check
          %p337 = pneg %p264
        $region26: #{tpu_custom_call.1} parent=11 // pred_check_branch
          %339 = sbr.rel (%p337) target = $region28
        $region27: #{tpu_custom_call.1} parent=11 // pred_region
          _
        $region28: #{tpu_custom_call.1} parent=11 // pred_fallthru
          _
        // Predicated region
        $region29: #{tpu_custom_call.1} parent=11 // pred_check
          %p340 = pneg %p285
        $region30: #{tpu_custom_call.1} parent=11 // pred_check_branch
          %342 = sbr.rel (%p340) target = $region32
        $region31: #{tpu_custom_call.1} parent=11 // pred_region
          _
        $region32: #{tpu_custom_call.1} parent=11 // pred_fallthru
          _
      $region12: #{tpu_custom_call.1} parent=5 // pred_fallthru
        _
      %p343 = scmp.lt.s32.totalorder %s28, 2
      // Predicated region
      $region33: #{tpu_custom_call.1} parent=5 // pred_check
        %p344 = pneg %p343
      $region34: #{tpu_custom_call.1} parent=5 // pred_check_branch
        %346 = sbr.rel (%p344) target = $region36
      $region35: #{tpu_custom_call.1} parent=5 // pred_region
        // Predicated region
        $region37: #{tpu_custom_call.1} parent=35 // pred_check
          %p347 = pneg %p62
        $region38: #{tpu_custom_call.1} parent=35 // pred_check_branch
          %349 = sbr.rel (%p347) target = $region40
        $region39: #{tpu_custom_call.1} parent=35 // pred_region
          %s350 = sand.u32 %s52, 1
          %s351 = scalar_lea.sflag [#allocation3], %s350
          %s352 = sand.u32 %s52, 1
          %s353 = smul.addr %s352, 64
          %s354 = scalar_lea.vmem [#allocation2], %s353
          %s355 = smul.u32 2, %s36
          %357 = vsyncadd %s351, 0
          %s358 = smul.addr %s35, 8
          %s359 = sadd.s32 %s355, %s358
          %s360 = smul.addr %s359, 8
          %s361 = scalar_lea.hbm %s0, %s360
          %s362 = sshll.u32 %s361, 4
          %s363 = int_to_ptr.hbm [resolvable:$true] %s362
          %s364 = sshll.u32 %s354, 4
          %s365 = int_to_ptr.vmem [resolvable:$true] %s364
          %370 = dma.hbm_to_vmem [thread:$0]  %s363, 1024, %s365, %s351, 256, 256, 16
        $region40: #{tpu_custom_call.1} parent=35 // pred_fallthru
          _
        // Predicated region
        $region41: #{tpu_custom_call.1} parent=35 // pred_check
          %p371 = pneg %p90
        $region42: #{tpu_custom_call.1} parent=35 // pred_check_branch
          %373 = sbr.rel (%p371) target = $region44
        $region43: #{tpu_custom_call.1} parent=35 // pred_region
          %s374 = sand.u32 %s28, 1
          %s375 = scalar_lea.sflag [#allocation6], %s374
          %s376 = sand.u32 %s80, 1
          %s377 = smul.addr %s376, 64
          %s378 = scalar_lea.vmem [#allocation5], %s377
          %s379 = smul.u32 2, %s36
          %381 = vsyncadd %s375, 0
          %s382 = smul.addr %s35, 8
          %s383 = sadd.s32 %s379, %s382
          %s384 = smul.addr %s383, 8
          %s385 = scalar_lea.hbm %s1, %s384
          %s386 = sshll.u32 %s385, 4
          %s387 = int_to_ptr.hbm [resolvable:$true] %s386
          %s388 = sshll.u32 %s378, 4
          %s389 = int_to_ptr.vmem [resolvable:$true] %s388
          %394 = dma.hbm_to_vmem [thread:$0]  %s387, 1024, %s389, %s375, 256, 256, 16
        $region44: #{tpu_custom_call.1} parent=35 // pred_fallthru
          _
        // Predicated region
        $region45: #{tpu_custom_call.1} parent=35 // pred_check
          %p395 = pneg %p118
        $region46: #{tpu_custom_call.1} parent=35 // pred_check_branch
          %397 = sbr.rel (%p395) target = $region48
        $region47: #{tpu_custom_call.1} parent=35 // pred_region
          %s398 = sand.u32 %s28, 1
          %s399 = scalar_lea.sflag [#allocation6], %s398
          %s400 = sand.u32 %s108, 1
          %s401 = smul.addr %s400, 64
          %s402 = scalar_lea.vmem [#allocation7], %s401
          %s403 = smul.u32 2, %s36
          %405 = vsyncadd %s399, 0
          %s406 = smul.addr %s35, 8
          %s407 = sadd.s32 %s403, %s406
          %s408 = smul.addr %s407, 8
          %s409 = scalar_lea.hbm %s2, %s408
          %s410 = sshll.u32 %s409, 4
          %s411 = int_to_ptr.hbm [resolvable:$true] %s410
          %s412 = sshll.u32 %s402, 4
          %s413 = int_to_ptr.vmem [resolvable:$true] %s412
          %418 = dma.hbm_to_vmem [thread:$0]  %s411, 1024, %s413, %s399, 256, 256, 16
        $region48: #{tpu_custom_call.1} parent=35 // pred_fallthru
          _
        // Predicated region
        $region49: #{tpu_custom_call.1} parent=35 // pred_check
          %p419 = pneg %p146
        $region50: #{tpu_custom_call.1} parent=35 // pred_check_branch
          %421 = sbr.rel (%p419) target = $region52
        $region51: #{tpu_custom_call.1} parent=35 // pred_region
          %s422 = sand.u32 %s136, 1
          %s423 = scalar_lea.sflag [#allocation9], %s422
          %s424 = sand.u32 %s136, 1
          %s425 = smul.addr %s424, 64
          %s426 = scalar_lea.vmem [#allocation8], %s425
          %s427 = smul.u32 2, %s36
          %429 = vsyncadd %s423, 0
          %s430 = smul.addr %s35, 8
          %s431 = sadd.s32 %s427, %s430
          %s432 = smul.addr %s431, 8
          %s433 = scalar_lea.hbm %s3, %s432
          %s434 = sshll.u32 %s433, 4
          %s435 = int_to_ptr.hbm [resolvable:$true] %s434
          %s436 = sshll.u32 %s426, 4
          %s437 = int_to_ptr.vmem [resolvable:$true] %s436
          %442 = dma.hbm_to_vmem [thread:$0]  %s435, 1024, %s437, %s423, 256, 256, 16
        $region52: #{tpu_custom_call.1} parent=35 // pred_fallthru
          _
        // Predicated region
        $region53: #{tpu_custom_call.1} parent=35 // pred_check
          %p443 = pneg %p174
        $region54: #{tpu_custom_call.1} parent=35 // pred_check_branch
          %445 = sbr.rel (%p443) target = $region56
        $region55: #{tpu_custom_call.1} parent=35 // pred_region
          %s446 = smul.u32 2, %s36
          %p447 = scmp.lt.s32.totalorder %s35, 1
          %s448 = scalar_select %p447, %s35, 1
          %p449 = scmp.lt.s32.totalorder %s446, 1
          %s450 = scalar_select %p449, %s446, 1
          %s451 = smul.addr %s448, 2
          %s452 = sadd.s32 %s450, %s451
          %s453 = scalar_lea.vmem %s4, %s452
          %s454 = smul.u32 2, %s36
        $region56: #{tpu_custom_call.1} parent=35 // pred_fallthru
          _
      $region36: #{tpu_custom_call.1} parent=5 // pred_fallthru
        _
      %p455 = scmp.le.s32.totalorder 1, %s28
      %p456 = scmp.lt.s32.totalorder %s28, 3
      %p457 = pnand %p455, %p456
      %p458 = pneg %p457
      // Predicated region
      $region57: #{tpu_custom_call.1} parent=5 // pred_check
        _
      $region58: #{tpu_custom_call.1} parent=5 // pred_check_branch
        %460 = sbr.rel (%p457) target = $region60
      $region59: #{tpu_custom_call.1} parent=5 // pred_region
        %s461 = ssub.s32 %s28, 1
        %s462 = sand.u32 %s55, 1
        %s463 = scalar_lea.sflag [#allocation3], %s462
        %s464 = sand.u32 %s55, 1
        %s465 = smul.addr %s464, 64
        %s466 = scalar_lea.vmem [#allocation2], %s465
        // Predicated region
        $region61: #{tpu_custom_call.1} parent=59 // pred_check
          %p467 = pneg %p68
        $region62: #{tpu_custom_call.1} parent=59 // pred_check_branch
          %469 = sbr.rel (%p467) target = $region64
        $region63: #{tpu_custom_call.1} parent=59 // pred_region
          %471 = dma.done %s463, 1024
        $region64: #{tpu_custom_call.1} parent=59 // pred_fallthru
          _
        %s472 = sand.u32 %s33, 1
        %s473 = scalar_lea.sflag [#allocation6], %s472
        %s474 = sand.u32 %s83, 1
        %s475 = smul.addr %s474, 64
        %s476 = scalar_lea.vmem [#allocation5], %s475
        // Predicated region
        $region65: #{tpu_custom_call.1} parent=59 // pred_check
          %p477 = pneg %p96
        $region66: #{tpu_custom_call.1} parent=59 // pred_check_branch
          %479 = sbr.rel (%p477) target = $region68
        $region67: #{tpu_custom_call.1} parent=59 // pred_region
          %481 = dma.done %s473, 1024
        $region68: #{tpu_custom_call.1} parent=59 // pred_fallthru
          _
        %s482 = sand.u32 %s33, 1
        %s483 = scalar_lea.sflag [#allocation6], %s482
        %s484 = sand.u32 %s111, 1
        %s485 = smul.addr %s484, 64
        %s486 = scalar_lea.vmem [#allocation7], %s485
        // Predicated region
        $region69: #{tpu_custom_call.1} parent=59 // pred_check
          %p487 = pneg %p124
        $region70: #{tpu_custom_call.1} parent=59 // pred_check_branch
          %489 = sbr.rel (%p487) target = $region72
        $region71: #{tpu_custom_call.1} parent=59 // pred_region
          %491 = dma.done %s483, 1024
        $region72: #{tpu_custom_call.1} parent=59 // pred_fallthru
          _
        %s492 = sand.u32 %s139, 1
        %s493 = scalar_lea.sflag [#allocation9], %s492
        %s494 = sand.u32 %s139, 1
        %s495 = smul.addr %s494, 64
        %s496 = scalar_lea.vmem [#allocation8], %s495
        // Predicated region
        $region73: #{tpu_custom_call.1} parent=59 // pred_check
          %p497 = pneg %p152
        $region74: #{tpu_custom_call.1} parent=59 // pred_check_branch
          %499 = sbr.rel (%p497) target = $region76
        $region75: #{tpu_custom_call.1} parent=59 // pred_region
          %501 = dma.done %s493, 1024
        $region76: #{tpu_custom_call.1} parent=59 // pred_fallthru
          _
        %s502 = sand.u32 %s55, 1
        %s503 = scalar_lea.sflag [#allocation3], %s502
        %s504 = sand.u32 %s55, 1
        %s505 = smul.addr %s504, 64
        %s506 = scalar_lea.vmem [#allocation2], %s505
        %p507 = pneg %p68
        %p508 = pneg %p65
        %s509 = sand.u32 %s33, 1
        %s510 = scalar_lea.sflag [#allocation6], %s509
        %s511 = sand.u32 %s83, 1
        %s512 = smul.addr %s511, 64
        %s513 = scalar_lea.vmem [#allocation5], %s512
        %p514 = pneg %p96
        %p515 = pneg %p93
        %s516 = sand.u32 %s33, 1
        %s517 = scalar_lea.sflag [#allocation6], %s516
        %s518 = sand.u32 %s111, 1
        %s519 = smul.addr %s518, 64
        %s520 = scalar_lea.vmem [#allocation7], %s519
        %p521 = pneg %p124
        %p522 = pneg %p121
        %s523 = sand.u32 %s139, 1
        %s524 = scalar_lea.sflag [#allocation9], %s523
        %s525 = sand.u32 %s139, 1
        %s526 = smul.addr %s525, 64
        %s527 = scalar_lea.vmem [#allocation8], %s526
        %p528 = pneg %p152
        %p529 = pneg %p149
        %s530 = smul.u32 2, %s38
        %p531 = scmp.lt.s32.totalorder %s37, 1
        %s532 = scalar_select %p531, %s37, 1
        %p533 = scmp.lt.s32.totalorder %s530, 1
        %s534 = scalar_select %p533, %s530, 1
        %s535 = smul.addr %s532, 2
        %s536 = sadd.s32 %s534, %s535
        %s537 = scalar_lea.vmem %s4, %s536
        %p538 = pneg %p180
        %p539 = pneg %p177
        %p540 = pneg %p201
        %p541 = pneg %p198
        %p542 = pneg %p222
        %p543 = pneg %p219
        %p544 = pneg %p243
        %p545 = pneg %p240
        %p546 = pneg %p264
        %p547 = pneg %p261
        %p548 = pneg %p285
        %p549 = pneg %p282
        %p550 = pneg %p313
        %p551 = pneg %p310
        %s552 = sand.u32 %s300, 1
        %s553 = scalar_lea.sflag [#allocation4], %s552
        %s554 = sand.u32 %s300, 1
        %s555 = smul.addr %s554, 64
        %s556 = scalar_lea.vmem [#allocation10], %s555
        %s557 = smul.u32 2, %s38
        %s558 = smul.u32 2, %s38
        %s559 = smul.u32 2, %s38
        %s560 = smul.u32 2, %s38
        %s561 = smul.u32 2, %s38
        %p562 = scmp.lt.s32.totalorder %s37, 1
        %s563 = scalar_select %p562, %s37, 1
        %p564 = scmp.lt.s32.totalorder %s561, 1
        %s565 = scalar_select %p564, %s561, 1
        %s566 = smul.addr %s563, 2
        %s567 = sadd.s32 %s565, %s566
        %s568 = scalar_lea.vmem %s4, %s567
        %s569 = smul.u32 2, %s38
        %s570 = smul.u32 2, %s38
        %v572 = vld [vmem:[%s568] sm:$0x3]
        %v573 = vld [vmem:[%s466] sm:$0xff]
        %v574 = vld [vmem:[%s466 + $0x8] sm:$0xff]
        %v575 = vld [vmem:[%s466 + $0x10] sm:$0xff]
        %v576 = vld [vmem:[%s466 + $0x18] sm:$0xff]
        %v577 = vld [vmem:[%s466 + $0x20] sm:$0xff]
        %v578 = vld [vmem:[%s466 + $0x28] sm:$0xff]
        %v579 = vld [vmem:[%s466 + $0x30] sm:$0xff]
        %v580 = vld [vmem:[%s466 + $0x38] sm:$0xff]
        %v581 = vpack.c.bf16 %v575, %v573
        %v582 = vpack.c.bf16 %v576, %v574
        %v583 = vpack.c.bf16 %v579, %v577
        %v584 = vpack.c.bf16 %v580, %v578
        %v585 = vld [vmem:[%s5] sm:$0xf]
        %v586 = vld [vmem:[%s5 + $0x4] sm:$0xf]
        %v587 = vld [vmem:[%s5 + $0x8] sm:$0xf]
        %v588 = vld [vmem:[%s5 + $0xc] sm:$0xf]
        %v589 = vld [vmem:[%s5 + $0x10] sm:$0xf]
        %v590 = vld [vmem:[%s5 + $0x14] sm:$0xf]
        %v591 = vld [vmem:[%s5 + $0x18] sm:$0xf]
        %v592 = vld [vmem:[%s5 + $0x1c] sm:$0xf]
        %v593 = vld [vmem:[%s6] sm:$0xf]
        %v594 = vld [vmem:[%s6 + $0x4] sm:$0xf]
        %v595 = vld [vmem:[%s6 + $0x8] sm:$0xf]
        %v596 = vld [vmem:[%s6 + $0xc] sm:$0xf]
        %v597 = vld [vmem:[%s6 + $0x10] sm:$0xf]
        %v598 = vld [vmem:[%s6 + $0x14] sm:$0xf]
        %v599 = vld [vmem:[%s6 + $0x18] sm:$0xf]
        %v600 = vld [vmem:[%s6 + $0x1c] sm:$0xf]
        %v601 = vld [vmem:[%s8] sm:$0xf]
        %v602 = vld [vmem:[%s8 + $0x4] sm:$0xf]
        %v603 = vld [vmem:[%s8 + $0x8] sm:$0xf]
        %v604 = vld [vmem:[%s8 + $0xc] sm:$0xf]
        %v605 = vld [vmem:[%s7] sm:$0xff]
        %v606 = vld [vmem:[%s7 + $0x8] sm:$0xff]
        %v607 = vld [vmem:[%s7 + $0x10] sm:$0xff]
        %v608 = vld [vmem:[%s7 + $0x18] sm:$0xff]
        %v609 = vld [vmem:[%s7 + $0x20] sm:$0xff]
        %v610 = vld [vmem:[%s7 + $0x28] sm:$0xff]
        %v611 = vld [vmem:[%s7 + $0x30] sm:$0xff]
        %v612 = vld [vmem:[%s7 + $0x38] sm:$0xff]
        %v613 = vld [vmem:[%s9] sm:$0xff]
        %v614 = vld [vmem:[%s9 + $0x8] sm:$0xff]
        %v615 = vld [vmem:[%s9 + $0x10] sm:$0xff]
        %v616 = vld [vmem:[%s9 + $0x18] sm:$0xff]
        %v625 = vunpack.c.l.b16 %v585
        %v626 = vunpack.c.l.b16 %v586
        %v627 = vunpack.c.l.b16 %v587
        %v628 = vunpack.c.l.b16 %v588
        %v629 = vunpack.c.l.b16 %v589
        %v630 = vunpack.c.l.b16 %v590
        %v631 = vunpack.c.l.b16 %v591
        %v632 = vunpack.c.l.b16 %v592
        %v633 = vpack.c.b16 %v626, %v625
        %v634 = vpack.c.b16 %v628, %v627
        %v635 = vpack.c.b16 %v630, %v629
        %v636 = vpack.c.b16 %v632, %v631
        %vm637 = vcmask 261120
        %v639 = vsel %vm637, %v633, 0
        %v642 = vsel %vm637, %v634, 0
        %v645 = vsel %vm637, %v635, 0
        %v648 = vsel %vm637, %v636, 0
        %650 = vmatpush.bf16.msra.mxu0 0
        %651 = vmatpush.bf16.msra.mxu0 0
        %652 = vmatpush.bf16.msra.mxu0 0
        %653 = vmatpush.bf16.msra.mxu0 0
        %654 = vmatpush.bf16.msra.mxu0 0
        %655 = vmatpush.bf16.msra.mxu0 0
        %656 = vmatpush.bf16.msra.mxu0 %v583
        %657 = vmatpush.bf16.msra.mxu0 %v581
        %658 = vmatmul.bf16.gmra.mxu0 %v639
        %v659 = vpop.f32.mrf.mxu0
        %v660 = vadd.f32 0.0, %v659
        %v661 = vpop.f32.mrf.mxu0
        %v662 = vadd.f32 0.0, %v661
        %663 = vmatmul.bf16.gmra.mxu0 %v642
        %v664 = vpop.f32.mrf.mxu0
        %v665 = vadd.f32 0.0, %v664
        %v666 = vpop.f32.mrf.mxu0
        %v667 = vadd.f32 0.0, %v666
        %668 = vmatmul.bf16.gmra.mxu0 %v645
        %v669 = vpop.f32.mrf.mxu0
        %v670 = vadd.f32 0.0, %v669
        %v671 = vpop.f32.mrf.mxu0
        %v672 = vadd.f32 0.0, %v671
        %673 = vmatmul.bf16.gmra.mxu0 %v648
        %v674 = vpop.f32.mrf.mxu0
        %v675 = vadd.f32 0.0, %v674
        %v676 = vpop.f32.mrf.mxu0
        %v677 = vadd.f32 0.0, %v676
        %678 = vdwg.mxu0
        %679 = vmatpush.bf16.msra.mxu0 0
        %680 = vmatpush.bf16.msra.mxu0 0
        %681 = vmatpush.bf16.msra.mxu0 0
        %682 = vmatpush.bf16.msra.mxu0 0
        %683 = vmatpush.bf16.msra.mxu0 0
        %684 = vmatpush.bf16.msra.mxu0 0
        %685 = vmatpush.bf16.msra.mxu0 %v584
        %686 = vmatpush.bf16.msra.mxu0 %v582
        %687 = vmatmul.bf16.gmra.mxu0 %v639
        %v688 = vpop.f32.mrf.mxu0
        %v689 = vadd.f32 0.0, %v688
        %v690 = vpop.f32.mrf.mxu0
        %v691 = vadd.f32 0.0, %v690
        %692 = vmatmul.bf16.gmra.mxu0 %v642
        %v693 = vpop.f32.mrf.mxu0
        %v694 = vadd.f32 0.0, %v693
        %v695 = vpop.f32.mrf.mxu0
        %v696 = vadd.f32 0.0, %v695
        %697 = vmatmul.bf16.gmra.mxu0 %v645
        %v698 = vpop.f32.mrf.mxu0
        %v699 = vadd.f32 0.0, %v698
        %v700 = vpop.f32.mrf.mxu0
        %v701 = vadd.f32 0.0, %v700
        %702 = vmatmul.bf16.gmra.mxu0 %v648
        %v703 = vpop.f32.mrf.mxu0
        %v704 = vadd.f32 0.0, %v703
        %v705 = vpop.f32.mrf.mxu0
        %v706 = vadd.f32 0.0, %v705
        %707 = vdwg.mxu0
        %v708 = vld [vmem:[%s476] sm:$0xff]
        %v709 = vld [vmem:[%s476 + $0x8] sm:$0xff]
        %v710 = vld [vmem:[%s476 + $0x10] sm:$0xff]
        %v711 = vld [vmem:[%s476 + $0x18] sm:$0xff]
        %v712 = vld [vmem:[%s476 + $0x20] sm:$0xff]
        %v713 = vld [vmem:[%s476 + $0x28] sm:$0xff]
        %v714 = vld [vmem:[%s476 + $0x30] sm:$0xff]
        %v715 = vld [vmem:[%s476 + $0x38] sm:$0xff]
        %v717 = vperm.slane %v572, 0
        %v718 = vperm.slane %v572, 1
        %v721 = vmul.f32 %v708, %v717
        %v722 = vmul.f32 %v709, %v718
        %v723 = vmul.f32 %v710, %v717
        %v724 = vmul.f32 %v711, %v718
        %v725 = vmul.f32 %v712, %v717
        %v726 = vmul.f32 %v713, %v718
        %v727 = vmul.f32 %v714, %v717
        %v728 = vmul.f32 %v715, %v718
        %v729 = vpack.c.bf16 %v722, %v721
        %v730 = vpack.c.bf16 %v724, %v723
        %v731 = vpack.c.bf16 %v726, %v725
        %v732 = vpack.c.bf16 %v728, %v727
        %v733 = vld [vmem:[%s486] sm:$0xff]
        %v734 = vld [vmem:[%s486 + $0x8] sm:$0xff]
        %v735 = vld [vmem:[%s486 + $0x10] sm:$0xff]
        %v736 = vld [vmem:[%s486 + $0x18] sm:$0xff]
        %v737 = vld [vmem:[%s486 + $0x20] sm:$0xff]
        %v738 = vld [vmem:[%s486 + $0x28] sm:$0xff]
        %v739 = vld [vmem:[%s486 + $0x30] sm:$0xff]
        %v740 = vld [vmem:[%s486 + $0x38] sm:$0xff]
        %v741 = vmul.f32 %v733, %v717
        %v742 = vmul.f32 %v734, %v718
        %v743 = vmul.f32 %v735, %v717
        %v744 = vmul.f32 %v736, %v718
        %v745 = vmul.f32 %v737, %v717
        %v746 = vmul.f32 %v738, %v718
        %v747 = vmul.f32 %v739, %v717
        %v748 = vmul.f32 %v740, %v718
        %v749 = vpack.c.bf16 %v742, %v741
        %v750 = vpack.c.bf16 %v744, %v743
        %v751 = vpack.c.bf16 %v746, %v745
        %v752 = vpack.c.bf16 %v748, %v747
        %v753 = vld [vmem:[%s496] sm:$0xff]
        %v754 = vld [vmem:[%s496 + $0x8] sm:$0xff]
        %v755 = vld [vmem:[%s496 + $0x10] sm:$0xff]
        %v756 = vld [vmem:[%s496 + $0x18] sm:$0xff]
        %v757 = vld [vmem:[%s496 + $0x20] sm:$0xff]
        %v758 = vld [vmem:[%s496 + $0x28] sm:$0xff]
        %v759 = vld [vmem:[%s496 + $0x30] sm:$0xff]
        %v760 = vld [vmem:[%s496 + $0x38] sm:$0xff]
        %v761 = vmul.f32 %v753, %v717
        %v762 = vmul.f32 %v754, %v718
        %v763 = vmul.f32 %v755, %v717
        %v764 = vmul.f32 %v756, %v718
        %v765 = vmul.f32 %v757, %v717
        %v766 = vmul.f32 %v758, %v718
        %v767 = vmul.f32 %v759, %v717
        %v768 = vmul.f32 %v760, %v718
        %v769 = vpack.c.bf16 %v762, %v761
        %v770 = vpack.c.bf16 %v764, %v763
        %v771 = vpack.c.bf16 %v766, %v765
        %v772 = vpack.c.bf16 %v768, %v767
        %v777 = vunpack.c.l.b16 %v729
        %v778 = vunpack.c.h.b16 %v729
        %v779 = vunpack.c.l.b16 %v730
        %v780 = vunpack.c.h.b16 %v730
        %v781 = vunpack.c.l.b16 %v731
        %v782 = vunpack.c.h.b16 %v731
        %v783 = vunpack.c.l.b16 %v732
        %v784 = vunpack.c.h.b16 %v732
        %v785 = vpack.c.b16 %v779, %v777
        %v786 = vpack.c.b16 %v780, %v778
        %v787 = vpack.c.b16 %v783, %v781
        %v788 = vpack.c.b16 %v784, %v782
        %v797 = vunpack.c.l.b16 %v749
        %v798 = vunpack.c.h.b16 %v749
        %v799 = vunpack.c.l.b16 %v750
        %v800 = vunpack.c.h.b16 %v750
        %v801 = vunpack.c.l.b16 %v751
        %v802 = vunpack.c.h.b16 %v751
        %v803 = vunpack.c.l.b16 %v752
        %v804 = vunpack.c.h.b16 %v752
        %v805 = vpack.c.b16 %v799, %v797
        %v806 = vpack.c.b16 %v800, %v798
        %v807 = vpack.c.b16 %v803, %v801
        %v808 = vpack.c.b16 %v804, %v802
        %v817 = vunpack.c.l.b16 %v769
        %v818 = vunpack.c.h.b16 %v769
        %v819 = vunpack.c.l.b16 %v770
        %v820 = vunpack.c.h.b16 %v770
        %v821 = vunpack.c.l.b16 %v771
        %v822 = vunpack.c.h.b16 %v771
        %v823 = vunpack.c.l.b16 %v772
        %v824 = vunpack.c.h.b16 %v772
        %v825 = vpack.c.b16 %v819, %v817
        %v826 = vpack.c.b16 %v820, %v818
        %v827 = vpack.c.b16 %v823, %v821
        %v828 = vpack.c.b16 %v824, %v822
        %v841 = vunpack.c.l.b16 %v593
        %v842 = vunpack.c.l.b16 %v594
        %v843 = vunpack.c.l.b16 %v595
        %v844 = vunpack.c.l.b16 %v596
        %v845 = vunpack.c.l.b16 %v597
        %v846 = vunpack.c.l.b16 %v598
        %v847 = vunpack.c.l.b16 %v599
        %v848 = vunpack.c.l.b16 %v600
        %v849 = vpack.c.b16 %v842, %v841
        %v850 = vpack.c.b16 %v844, %v843
        %v851 = vpack.c.b16 %v846, %v845
        %v852 = vpack.c.b16 %v848, %v847
        %v854 = vsel %vm637, %v849, 0
        %v857 = vsel %vm637, %v850, 0
        %v860 = vsel %vm637, %v851, 0
        %v863 = vsel %vm637, %v852, 0
        %865 = vmatpush.bf16.msra.mxu0 0
        %866 = vmatpush.bf16.msra.mxu0 0
        %867 = vmatpush.bf16.msra.mxu0 0
        %868 = vmatpush.bf16.msra.mxu0 0
        %869 = vmatpush.bf16.msra.mxu0 0
        %870 = vmatpush.bf16.msra.mxu0 0
        %871 = vmatpush.bf16.msra.mxu0 %v787
        %872 = vmatpush.bf16.msra.mxu0 %v785
        %873 = vmatmul.bf16.gmra.mxu0 %v854
        %v874 = vpop.f32.mrf.mxu0
        %v875 = vadd.f32 %v660, %v874
        %v876 = vpop.f32.mrf.mxu0
        %v877 = vadd.f32 %v662, %v876
        %878 = vmatmul.bf16.gmra.mxu0 %v857
        %v879 = vpop.f32.mrf.mxu0
        %v880 = vadd.f32 %v665, %v879
        %v881 = vpop.f32.mrf.mxu0
        %v882 = vadd.f32 %v667, %v881
        %883 = vmatmul.bf16.gmra.mxu0 %v860
        %v884 = vpop.f32.mrf.mxu0
        %v885 = vadd.f32 %v670, %v884
        %v886 = vpop.f32.mrf.mxu0
        %v887 = vadd.f32 %v672, %v886
        %888 = vmatmul.bf16.gmra.mxu0 %v863
        %v889 = vpop.f32.mrf.mxu0
        %v890 = vadd.f32 %v675, %v889
        %v891 = vpop.f32.mrf.mxu0
        %v892 = vadd.f32 %v677, %v891
        %893 = vdwg.mxu0
        %894 = vmatpush.bf16.msra.mxu0 0
        %895 = vmatpush.bf16.msra.mxu0 0
        %896 = vmatpush.bf16.msra.mxu0 0
        %897 = vmatpush.bf16.msra.mxu0 0
        %898 = vmatpush.bf16.msra.mxu0 0
        %899 = vmatpush.bf16.msra.mxu0 0
        %900 = vmatpush.bf16.msra.mxu0 %v788
        %901 = vmatpush.bf16.msra.mxu0 %v786
        %902 = vmatmul.bf16.gmra.mxu0 %v854
        %v903 = vpop.f32.mrf.mxu0
        %v904 = vadd.f32 %v689, %v903
        %v905 = vpop.f32.mrf.mxu0
        %v906 = vadd.f32 %v691, %v905
        %907 = vmatmul.bf16.gmra.mxu0 %v857
        %v908 = vpop.f32.mrf.mxu0
        %v909 = vadd.f32 %v694, %v908
        %v910 = vpop.f32.mrf.mxu0
        %v911 = vadd.f32 %v696, %v910
        %912 = vmatmul.bf16.gmra.mxu0 %v860
        %v913 = vpop.f32.mrf.mxu0
        %v914 = vadd.f32 %v699, %v913
        %v915 = vpop.f32.mrf.mxu0
        %v916 = vadd.f32 %v701, %v915
        %917 = vmatmul.bf16.gmra.mxu0 %v863
        %v918 = vpop.f32.mrf.mxu0
        %v919 = vadd.f32 %v704, %v918
        %v920 = vpop.f32.mrf.mxu0
        %v921 = vadd.f32 %v706, %v920
        %922 = vdwg.mxu0
        %923 = vmatpush.bf16.msra.mxu0 0
        %924 = vmatpush.bf16.msra.mxu0 0
        %925 = vmatpush.bf16.msra.mxu0 0
        %926 = vmatpush.bf16.msra.mxu0 0
        %927 = vmatpush.bf16.msra.mxu0 0
        %928 = vmatpush.bf16.msra.mxu0 0
        %929 = vmatpush.bf16.msra.mxu0 %v807
        %930 = vmatpush.bf16.msra.mxu0 %v805
        %931 = vmatmul.bf16.gmra.mxu0 %v854
        %v932 = vpop.f32.mrf.mxu0
        %v933 = vadd.f32 %v660, %v932
        %v934 = vpop.f32.mrf.mxu0
        %v935 = vadd.f32 %v662, %v934
        %936 = vmatmul.bf16.gmra.mxu0 %v857
        %v937 = vpop.f32.mrf.mxu0
        %v938 = vadd.f32 %v665, %v937
        %v939 = vpop.f32.mrf.mxu0
        %v940 = vadd.f32 %v667, %v939
        %941 = vmatmul.bf16.gmra.mxu0 %v860
        %v942 = vpop.f32.mrf.mxu0
        %v943 = vadd.f32 %v670, %v942
        %v944 = vpop.f32.mrf.mxu0
        %v945 = vadd.f32 %v672, %v944
        %946 = vmatmul.bf16.gmra.mxu0 %v863
        %v947 = vpop.f32.mrf.mxu0
        %v948 = vadd.f32 %v675, %v947
        %v949 = vpop.f32.mrf.mxu0
        %v950 = vadd.f32 %v677, %v949
        %951 = vdwg.mxu0
        %952 = vmatpush.bf16.msra.mxu0 0
        %953 = vmatpush.bf16.msra.mxu0 0
        %954 = vmatpush.bf16.msra.mxu0 0
        %955 = vmatpush.bf16.msra.mxu0 0
        %956 = vmatpush.bf16.msra.mxu0 0
        %957 = vmatpush.bf16.msra.mxu0 0
        %958 = vmatpush.bf16.msra.mxu0 %v808
        %959 = vmatpush.bf16.msra.mxu0 %v806
        %960 = vmatmul.bf16.gmra.mxu0 %v854
        %v961 = vpop.f32.mrf.mxu0
        %v962 = vadd.f32 %v689, %v961
        %v963 = vpop.f32.mrf.mxu0
        %v964 = vadd.f32 %v691, %v963
        %965 = vmatmul.bf16.gmra.mxu0 %v857
        %v966 = vpop.f32.mrf.mxu0
        %v967 = vadd.f32 %v694, %v966
        %v968 = vpop.f32.mrf.mxu0
        %v969 = vadd.f32 %v696, %v968
        %970 = vmatmul.bf16.gmra.mxu0 %v860
        %v971 = vpop.f32.mrf.mxu0
        %v972 = vadd.f32 %v699, %v971
        %v973 = vpop.f32.mrf.mxu0
        %v974 = vadd.f32 %v701, %v973
        %975 = vmatmul.bf16.gmra.mxu0 %v863
        %v976 = vpop.f32.mrf.mxu0
        %v977 = vadd.f32 %v704, %v976
        %v978 = vpop.f32.mrf.mxu0
        %v979 = vadd.f32 %v706, %v978
        %980 = vdwg.mxu0
        %981 = vmatpush.bf16.msra.mxu0 0
        %982 = vmatpush.bf16.msra.mxu0 0
        %983 = vmatpush.bf16.msra.mxu0 0
        %984 = vmatpush.bf16.msra.mxu0 0
        %985 = vmatpush.bf16.msra.mxu0 0
        %986 = vmatpush.bf16.msra.mxu0 0
        %987 = vmatpush.bf16.msra.mxu0 %v827
        %988 = vmatpush.bf16.msra.mxu0 %v825
        %989 = vmatmul.bf16.gmra.mxu0 %v854
        %v990 = vpop.f32.mrf.mxu0
        %v991 = vadd.f32 %v660, %v990
        %v992 = vpop.f32.mrf.mxu0
        %v993 = vadd.f32 %v662, %v992
        %994 = vmatmul.bf16.gmra.mxu0 %v857
        %v995 = vpop.f32.mrf.mxu0
        %v996 = vadd.f32 %v665, %v995
        %v997 = vpop.f32.mrf.mxu0
        %v998 = vadd.f32 %v667, %v997
        %999 = vmatmul.bf16.gmra.mxu0 %v860
        %v1000 = vpop.f32.mrf.mxu0
        %v1001 = vadd.f32 %v670, %v1000
        %v1002 = vpop.f32.mrf.mxu0
        %v1003 = vadd.f32 %v672, %v1002
        %1004 = vmatmul.bf16.gmra.mxu0 %v863
        %v1005 = vpop.f32.mrf.mxu0
        %v1006 = vadd.f32 %v675, %v1005
        %v1007 = vpop.f32.mrf.mxu0
        %v1008 = vadd.f32 %v677, %v1007
        %1009 = vdwg.mxu0
        %1010 = vmatpush.bf16.msra.mxu0 0
        %1011 = vmatpush.bf16.msra.mxu0 0
        %1012 = vmatpush.bf16.msra.mxu0 0
        %1013 = vmatpush.bf16.msra.mxu0 0
        %1014 = vmatpush.bf16.msra.mxu0 0
        %1015 = vmatpush.bf16.msra.mxu0 0
        %1016 = vmatpush.bf16.msra.mxu0 %v828
        %1017 = vmatpush.bf16.msra.mxu0 %v826
        %1018 = vmatmul.bf16.gmra.mxu0 %v854
        %v1019 = vpop.f32.mrf.mxu0
        %v1020 = vadd.f32 %v689, %v1019
        %v1021 = vpop.f32.mrf.mxu0
        %v1022 = vadd.f32 %v691, %v1021
        %1023 = vmatmul.bf16.gmra.mxu0 %v857
        %v1024 = vpop.f32.mrf.mxu0
        %v1025 = vadd.f32 %v694, %v1024
        %v1026 = vpop.f32.mrf.mxu0
        %v1027 = vadd.f32 %v696, %v1026
        %1028 = vmatmul.bf16.gmra.mxu0 %v860
        %v1029 = vpop.f32.mrf.mxu0
        %v1030 = vadd.f32 %v699, %v1029
        %v1031 = vpop.f32.mrf.mxu0
        %v1032 = vadd.f32 %v701, %v1031
        %1033 = vmatmul.bf16.gmra.mxu0 %v863
        %v1034 = vpop.f32.mrf.mxu0
        %v1035 = vadd.f32 %v704, %v1034
        %v1036 = vpop.f32.mrf.mxu0
        %v1037 = vadd.f32 %v706, %v1036
        %1038 = vdwg.mxu0
        %1040 = vset.pattern.permute.xlu0 0
        %1041 = vperm.xlu0 %1040, %v605
        %v1042 = vpop.permute.xlu0 %1041
        %1045 = vset.pattern.permute.xlu0 0
        %1046 = vperm.xlu0 %1045, %v606
        %v1047 = vpop.permute.xlu0 %1046
        %1050 = vset.pattern.permute.xlu0 0
        %1051 = vperm.xlu0 %1050, %v607
        %v1052 = vpop.permute.xlu0 %1051
        %1055 = vset.pattern.permute.xlu0 0
        %1056 = vperm.xlu0 %1055, %v608
        %v1057 = vpop.permute.xlu0 %1056
        %1060 = vset.pattern.permute.xlu0 0
        %1061 = vperm.xlu0 %1060, %v609
        %v1062 = vpop.permute.xlu0 %1061
        %1065 = vset.pattern.permute.xlu0 0
        %1066 = vperm.xlu0 %1065, %v610
        %v1067 = vpop.permute.xlu0 %1066
        %1070 = vset.pattern.permute.xlu0 0
        %1071 = vperm.xlu0 %1070, %v611
        %v1072 = vpop.permute.xlu0 %1071
        %1075 = vset.pattern.permute.xlu0 0
        %1076 = vperm.xlu0 %1075, %v612
        %v1077 = vpop.permute.xlu0 %1076
        %v1079 = vadd.f32 %v875, %v1042
        %v1080 = vadd.f32 %v904, %v1042
        %v1081 = vadd.f32 %v933, %v1042
        %v1082 = vadd.f32 %v962, %v1042
        %v1083 = vadd.f32 %v991, %v1042
        %v1084 = vadd.f32 %v1020, %v1042
        %v1085 = vadd.f32 %v877, %v1047
        %v1086 = vadd.f32 %v906, %v1047
        %v1087 = vadd.f32 %v935, %v1047
        %v1088 = vadd.f32 %v964, %v1047
        %v1089 = vadd.f32 %v993, %v1047
        %v1090 = vadd.f32 %v1022, %v1047
        %v1091 = vadd.f32 %v880, %v1052
        %v1092 = vadd.f32 %v909, %v1052
        %v1093 = vadd.f32 %v938, %v1052
        %v1094 = vadd.f32 %v967, %v1052
        %v1095 = vadd.f32 %v996, %v1052
        %v1096 = vadd.f32 %v1025, %v1052
        %v1097 = vadd.f32 %v882, %v1057
        %v1098 = vadd.f32 %v911, %v1057
        %v1099 = vadd.f32 %v940, %v1057
        %v1100 = vadd.f32 %v969, %v1057
        %v1101 = vadd.f32 %v998, %v1057
        %v1102 = vadd.f32 %v1027, %v1057
        %v1103 = vadd.f32 %v885, %v1062
        %v1104 = vadd.f32 %v914, %v1062
        %v1105 = vadd.f32 %v943, %v1062
        %v1106 = vadd.f32 %v972, %v1062
        %v1107 = vadd.f32 %v1001, %v1062
        %v1108 = vadd.f32 %v1030, %v1062
        %v1109 = vadd.f32 %v887, %v1067
        %v1110 = vadd.f32 %v916, %v1067
        %v1111 = vadd.f32 %v945, %v1067
        %v1112 = vadd.f32 %v974, %v1067
        %v1113 = vadd.f32 %v1003, %v1067
        %v1114 = vadd.f32 %v1032, %v1067
        %v1115 = vadd.f32 %v890, %v1072
        %v1116 = vadd.f32 %v919, %v1072
        %v1117 = vadd.f32 %v948, %v1072
        %v1118 = vadd.f32 %v977, %v1072
        %v1119 = vadd.f32 %v1006, %v1072
        %v1120 = vadd.f32 %v1035, %v1072
        %v1121 = vadd.f32 %v892, %v1077
        %v1122 = vadd.f32 %v921, %v1077
        %v1123 = vadd.f32 %v950, %v1077
        %v1124 = vadd.f32 %v979, %v1077
        %v1125 = vadd.f32 %v1008, %v1077
        %v1126 = vadd.f32 %v1037, %v1077
        %v1127 = vmax.f32 %v1079, 0.0
        %v1128 = vmax.f32 %v1080, 0.0
        %v1129 = vmax.f32 %v1081, 0.0
        %v1130 = vmax.f32 %v1082, 0.0
        %v1131 = vmax.f32 %v1083, 0.0
        %v1132 = vmax.f32 %v1084, 0.0
        %v1133 = vmax.f32 %v1085, 0.0
        %v1134 = vmax.f32 %v1086, 0.0
        %v1135 = vmax.f32 %v1087, 0.0
        %v1136 = vmax.f32 %v1088, 0.0
        %v1137 = vmax.f32 %v1089, 0.0
        %v1138 = vmax.f32 %v1090, 0.0
        %v1139 = vmax.f32 %v1091, 0.0
        %v1140 = vmax.f32 %v1092, 0.0
        %v1141 = vmax.f32 %v1093, 0.0
        %v1142 = vmax.f32 %v1094, 0.0
        %v1143 = vmax.f32 %v1095, 0.0
        %v1144 = vmax.f32 %v1096, 0.0
        %v1145 = vmax.f32 %v1097, 0.0
        %v1146 = vmax.f32 %v1098, 0.0
        %v1147 = vmax.f32 %v1099, 0.0
        %v1148 = vmax.f32 %v1100, 0.0
        %v1149 = vmax.f32 %v1101, 0.0
        %v1150 = vmax.f32 %v1102, 0.0
        %v1151 = vmax.f32 %v1103, 0.0
        %v1152 = vmax.f32 %v1104, 0.0
        %v1153 = vmax.f32 %v1105, 0.0
        %v1154 = vmax.f32 %v1106, 0.0
        %v1155 = vmax.f32 %v1107, 0.0
        %v1156 = vmax.f32 %v1108, 0.0
        %v1157 = vmax.f32 %v1109, 0.0
        %v1158 = vmax.f32 %v1110, 0.0
        %v1159 = vmax.f32 %v1111, 0.0
        %v1160 = vmax.f32 %v1112, 0.0
        %v1161 = vmax.f32 %v1113, 0.0
        %v1162 = vmax.f32 %v1114, 0.0
        %v1163 = vmax.f32 %v1115, 0.0
        %v1164 = vmax.f32 %v1116, 0.0
        %v1165 = vmax.f32 %v1117, 0.0
        %v1166 = vmax.f32 %v1118, 0.0
        %v1167 = vmax.f32 %v1119, 0.0
        %v1168 = vmax.f32 %v1120, 0.0
        %v1169 = vmax.f32 %v1121, 0.0
        %v1170 = vmax.f32 %v1122, 0.0
        %v1171 = vmax.f32 %v1123, 0.0
        %v1172 = vmax.f32 %v1124, 0.0
        %v1173 = vmax.f32 %v1125, 0.0
        %v1174 = vmax.f32 %v1126, 0.0
        %v1175 = vpack.c.bf16 %v1133, %v1127
        %v1176 = vpack.c.bf16 %v1134, %v1128
        %v1177 = vpack.c.bf16 %v1135, %v1129
        %v1178 = vpack.c.bf16 %v1136, %v1130
        %v1179 = vpack.c.bf16 %v1137, %v1131
        %v1180 = vpack.c.bf16 %v1138, %v1132
        %v1181 = vpack.c.bf16 %v1145, %v1139
        %v1182 = vpack.c.bf16 %v1146, %v1140
        %v1183 = vpack.c.bf16 %v1147, %v1141
        %v1184 = vpack.c.bf16 %v1148, %v1142
        %v1185 = vpack.c.bf16 %v1149, %v1143
        %v1186 = vpack.c.bf16 %v1150, %v1144
        %v1187 = vpack.c.bf16 %v1157, %v1151
        %v1188 = vpack.c.bf16 %v1158, %v1152
        %v1189 = vpack.c.bf16 %v1159, %v1153
        %v1190 = vpack.c.bf16 %v1160, %v1154
        %v1191 = vpack.c.bf16 %v1161, %v1155
        %v1192 = vpack.c.bf16 %v1162, %v1156
        %v1193 = vpack.c.bf16 %v1169, %v1163
        %v1194 = vpack.c.bf16 %v1170, %v1164
        %v1195 = vpack.c.bf16 %v1171, %v1165
        %v1196 = vpack.c.bf16 %v1172, %v1166
        %v1197 = vpack.c.bf16 %v1173, %v1167
        %v1198 = vpack.c.bf16 %v1174, %v1168
        %1200 = vset.pattern.permute.xlu0 0
        %1201 = vperm.xlu0 %1200, %v613
        %v1202 = vpop.permute.xlu0 %1201
        %1205 = vset.pattern.permute.xlu0 0
        %1206 = vperm.xlu0 %1205, %v614
        %v1207 = vpop.permute.xlu0 %1206
        %1210 = vset.pattern.permute.xlu0 0
        %1211 = vperm.xlu0 %1210, %v615
        %v1212 = vpop.permute.xlu0 %1211
        %1215 = vset.pattern.permute.xlu0 0
        %1216 = vperm.xlu0 %1215, %v616
        %v1217 = vpop.permute.xlu0 %1216
        %v1223 = vunpack.c.l.b16 %v601
        %v1224 = vunpack.c.l.b16 %v602
        %v1225 = vunpack.c.l.b16 %v603
        %v1226 = vunpack.c.l.b16 %v604
        %v1227 = vpack.c.b16 %v1224, %v1223
        %v1228 = vpack.c.b16 %v1226, %v1225
        %vm1229 = vcmask 523264
        %v1231 = vsel %vm1229, %v1227, 0
        %v1234 = vsel %vm1229, %v1228, 0
        %1236 = vmatpush.bf16.msra.mxu0 0
        %1237 = vmatpush.bf16.msra.mxu0 0
        %1238 = vmatpush.bf16.msra.mxu0 0
        %1239 = vmatpush.bf16.msra.mxu0 0
        %1240 = vmatpush.bf16.msra.mxu0 %v1193
        %1241 = vmatpush.bf16.msra.mxu0 %v1187
        %1242 = vmatpush.bf16.msra.mxu0 %v1181
        %1243 = vmatpush.bf16.msra.mxu0 %v1175
        %1244 = vmatmul.bf16.gmra.mxu0 %v1231
        %v1245 = vpop.f32.mrf.mxu0
        %v1246 = vadd.f32 %v1202, %v1245
        %v1247 = vpop.f32.mrf.mxu0
        %v1248 = vadd.f32 %v1207, %v1247
        %1249 = vmatmul.bf16.gmra.mxu0 %v1234
        %v1250 = vpop.f32.mrf.mxu0
        %v1251 = vadd.f32 %v1212, %v1250
        %v1252 = vpop.f32.mrf.mxu0
        %v1253 = vadd.f32 %v1217, %v1252
        %1254 = vdwg.mxu0
        %1255 = vmatpush.bf16.msra.mxu0 0
        %1256 = vmatpush.bf16.msra.mxu0 0
        %1257 = vmatpush.bf16.msra.mxu0 0
        %1258 = vmatpush.bf16.msra.mxu0 0
        %1259 = vmatpush.bf16.msra.mxu0 %v1194
        %1260 = vmatpush.bf16.msra.mxu0 %v1188
        %1261 = vmatpush.bf16.msra.mxu0 %v1182
        %1262 = vmatpush.bf16.msra.mxu0 %v1176
        %1263 = vmatmul.bf16.gmra.mxu0 %v1231
        %v1264 = vpop.f32.mrf.mxu0
        %v1265 = vadd.f32 %v1202, %v1264
        %v1266 = vpop.f32.mrf.mxu0
        %v1267 = vadd.f32 %v1207, %v1266
        %1268 = vmatmul.bf16.gmra.mxu0 %v1234
        %v1269 = vpop.f32.mrf.mxu0
        %v1270 = vadd.f32 %v1212, %v1269
        %v1271 = vpop.f32.mrf.mxu0
        %v1272 = vadd.f32 %v1217, %v1271
        %1273 = vdwg.mxu0
        %1274 = vmatpush.bf16.msra.mxu0 0
        %1275 = vmatpush.bf16.msra.mxu0 0
        %1276 = vmatpush.bf16.msra.mxu0 0
        %1277 = vmatpush.bf16.msra.mxu0 0
        %1278 = vmatpush.bf16.msra.mxu0 %v1195
        %1279 = vmatpush.bf16.msra.mxu0 %v1189
        %1280 = vmatpush.bf16.msra.mxu0 %v1183
        %1281 = vmatpush.bf16.msra.mxu0 %v1177
        %1282 = vmatmul.bf16.gmra.mxu0 %v1231
        %v1283 = vpop.f32.mrf.mxu0
        %v1284 = vadd.f32 %v1202, %v1283
        %v1285 = vpop.f32.mrf.mxu0
        %v1286 = vadd.f32 %v1207, %v1285
        %1287 = vmatmul.bf16.gmra.mxu0 %v1234
        %v1288 = vpop.f32.mrf.mxu0
        %v1289 = vadd.f32 %v1212, %v1288
        %v1290 = vpop.f32.mrf.mxu0
        %v1291 = vadd.f32 %v1217, %v1290
        %1292 = vdwg.mxu0
        %1293 = vmatpush.bf16.msra.mxu0 0
        %1294 = vmatpush.bf16.msra.mxu0 0
        %1295 = vmatpush.bf16.msra.mxu0 0
        %1296 = vmatpush.bf16.msra.mxu0 0
        %1297 = vmatpush.bf16.msra.mxu0 %v1196
        %1298 = vmatpush.bf16.msra.mxu0 %v1190
        %1299 = vmatpush.bf16.msra.mxu0 %v1184
        %1300 = vmatpush.bf16.msra.mxu0 %v1178
        %1301 = vmatmul.bf16.gmra.mxu0 %v1231
        %v1302 = vpop.f32.mrf.mxu0
        %v1303 = vadd.f32 %v1202, %v1302
        %v1304 = vpop.f32.mrf.mxu0
        %v1305 = vadd.f32 %v1207, %v1304
        %1306 = vmatmul.bf16.gmra.mxu0 %v1234
        %v1307 = vpop.f32.mrf.mxu0
        %v1308 = vadd.f32 %v1212, %v1307
        %v1309 = vpop.f32.mrf.mxu0
        %v1310 = vadd.f32 %v1217, %v1309
        %1311 = vdwg.mxu0
        %1312 = vmatpush.bf16.msra.mxu0 0
        %1313 = vmatpush.bf16.msra.mxu0 0
        %1314 = vmatpush.bf16.msra.mxu0 0
        %1315 = vmatpush.bf16.msra.mxu0 0
        %1316 = vmatpush.bf16.msra.mxu0 %v1197
        %1317 = vmatpush.bf16.msra.mxu0 %v1191
        %1318 = vmatpush.bf16.msra.mxu0 %v1185
        %1319 = vmatpush.bf16.msra.mxu0 %v1179
        %1320 = vmatmul.bf16.gmra.mxu0 %v1231
        %v1321 = vpop.f32.mrf.mxu0
        %v1322 = vadd.f32 %v1202, %v1321
        %v1323 = vpop.f32.mrf.mxu0
        %v1324 = vadd.f32 %v1207, %v1323
        %1325 = vmatmul.bf16.gmra.mxu0 %v1234
        %v1326 = vpop.f32.mrf.mxu0
        %v1327 = vadd.f32 %v1212, %v1326
        %v1328 = vpop.f32.mrf.mxu0
        %v1329 = vadd.f32 %v1217, %v1328
        %1330 = vdwg.mxu0
        %1331 = vmatpush.bf16.msra.mxu0 0
        %1332 = vmatpush.bf16.msra.mxu0 0
        %1333 = vmatpush.bf16.msra.mxu0 0
        %1334 = vmatpush.bf16.msra.mxu0 0
        %1335 = vmatpush.bf16.msra.mxu0 %v1198
        %1336 = vmatpush.bf16.msra.mxu0 %v1192
        %1337 = vmatpush.bf16.msra.mxu0 %v1186
        %1338 = vmatpush.bf16.msra.mxu0 %v1180
        %1339 = vmatmul.bf16.gmra.mxu0 %v1231
        %v1340 = vpop.f32.mrf.mxu0
        %v1341 = vadd.f32 %v1202, %v1340
        %v1342 = vpop.f32.mrf.mxu0
        %v1343 = vadd.f32 %v1207, %v1342
        %1344 = vmatmul.bf16.gmra.mxu0 %v1234
        %v1345 = vpop.f32.mrf.mxu0
        %v1346 = vadd.f32 %v1212, %v1345
        %v1347 = vpop.f32.mrf.mxu0
        %v1348 = vadd.f32 %v1217, %v1347
        %1349 = vdwg.mxu0
        %v1350 = vmax.f32 %v1246, 0.0
        %v1351 = vmax.f32 %v1265, 0.0
        %v1352 = vmax.f32 %v1284, 0.0
        %v1353 = vmax.f32 %v1303, 0.0
        %v1354 = vmax.f32 %v1322, 0.0
        %v1355 = vmax.f32 %v1341, 0.0
        %v1356 = vmax.f32 %v1248, 0.0
        %v1357 = vmax.f32 %v1267, 0.0
        %v1358 = vmax.f32 %v1286, 0.0
        %v1359 = vmax.f32 %v1305, 0.0
        %v1360 = vmax.f32 %v1324, 0.0
        %v1361 = vmax.f32 %v1343, 0.0
        %v1362 = vmax.f32 %v1251, 0.0
        %v1363 = vmax.f32 %v1270, 0.0
        %v1364 = vmax.f32 %v1289, 0.0
        %v1365 = vmax.f32 %v1308, 0.0
        %v1366 = vmax.f32 %v1327, 0.0
        %v1367 = vmax.f32 %v1346, 0.0
        %v1368 = vmax.f32 %v1253, 0.0
        %v1369 = vmax.f32 %v1272, 0.0
        %v1370 = vmax.f32 %v1291, 0.0
        %v1371 = vmax.f32 %v1310, 0.0
        %v1372 = vmax.f32 %v1329, 0.0
        %v1373 = vmax.f32 %v1348, 0.0
        %v1374 = vadd.f32 %v1350, %v1352
        %v1375 = vadd.f32 %v1351, %v1353
        %v1376 = vadd.f32 %v1356, %v1358
        %v1377 = vadd.f32 %v1357, %v1359
        %v1378 = vadd.f32 %v1362, %v1364
        %v1379 = vadd.f32 %v1363, %v1365
        %v1380 = vadd.f32 %v1368, %v1370
        %v1381 = vadd.f32 %v1369, %v1371
        %v1382 = vadd.f32 %v1374, %v1354
        %v1383 = vadd.f32 %v1375, %v1355
        %v1384 = vadd.f32 %v1376, %v1360
        %v1385 = vadd.f32 %v1377, %v1361
        %v1386 = vadd.f32 %v1378, %v1366
        %v1387 = vadd.f32 %v1379, %v1367
        %v1388 = vadd.f32 %v1380, %v1372
        %v1389 = vadd.f32 %v1381, %v1373
        %1390 = vst [vmem:[%s556] sm:$0xff] %v1382
        %1391 = vst [vmem:[%s556 + $0x8] sm:$0xff] %v1383
        %1392 = vst [vmem:[%s556 + $0x10] sm:$0xff] %v1384
        %1393 = vst [vmem:[%s556 + $0x18] sm:$0xff] %v1385
        %1394 = vst [vmem:[%s556 + $0x20] sm:$0xff] %v1386
        %1395 = vst [vmem:[%s556 + $0x28] sm:$0xff] %v1387
        %1396 = vst [vmem:[%s556 + $0x30] sm:$0xff] %v1388
        %1397 = vst [vmem:[%s556 + $0x38] sm:$0xff] %v1389
        %s1398 = sand.u32 %s300, 1
        %s1399 = scalar_lea.sflag [#allocation4], %s1398
        %s1400 = sand.u32 %s300, 1
        %s1401 = smul.addr %s1400, 64
        %s1402 = scalar_lea.vmem [#allocation10], %s1401
        // Predicated region
        $region77: #{tpu_custom_call.1} parent=59 // pred_check
          %p1403 = pneg %p310
        $region78: #{tpu_custom_call.1} parent=59 // pred_check_branch
          %1405 = sbr.rel (%p1403) target = $region80
        $region79: #{tpu_custom_call.1} parent=59 // pred_region
          %s1406 = smul.u32 2, %s38
          %1408 = vsyncadd %s1399, 0
          %s1409 = smul.addr %s37, 8
          %s1410 = sadd.s32 %s1406, %s1409
          %s1411 = smul.addr %s1410, 8
          %s1412 = scalar_lea.hbm %s10, %s1411
          %s1413 = sshll.u32 %s1402, 4
          %s1414 = int_to_ptr.vmem [resolvable:$true] %s1413
          %s1415 = sshll.u32 %s1412, 4
          %s1416 = int_to_ptr.hbm [resolvable:$true] %s1415
          %1421 = dma.vmem_to_hbm [thread:$0]  %s1414, 1024, %s1416, %s1399, 256, 256, 16
        $region80: #{tpu_custom_call.1} parent=59 // pred_fallthru
          _
      $region60: #{tpu_custom_call.1} parent=5 // pred_fallthru
        _
      %p1422 = scmp.le.s32.totalorder 2, %s28
      // Predicated region
      $region81: #{tpu_custom_call.1} parent=5 // pred_check
        %p1423 = pneg %p1422
      $region82: #{tpu_custom_call.1} parent=5 // pred_check_branch
        %1425 = sbr.rel (%p1423) target = $region84
      $region83: #{tpu_custom_call.1} parent=5 // pred_region
        %s1426 = ssub.s32 %s28, 2
        // Predicated region
        $region85: #{tpu_custom_call.1} parent=83 // pred_check
          %p1427 = pneg %p316
        $region86: #{tpu_custom_call.1} parent=83 // pred_check_branch
          %1429 = sbr.rel (%p1427) target = $region88
        $region87: #{tpu_custom_call.1} parent=83 // pred_region
          %s1430 = sand.u32 %s301, 1
          %s1431 = scalar_lea.sflag [#allocation4], %s1430
          %s1432 = sand.u32 %s301, 1
          %s1433 = smul.addr %s1432, 64
          %s1434 = scalar_lea.vmem [#allocation10], %s1433
          %1436 = dma.done %s1431, 1024
        $region88: #{tpu_custom_call.1} parent=83 // pred_fallthru
          _
      $region84: #{tpu_custom_call.1} parent=5 // pred_fallthru
        _
    $region6: #{tpu_custom_call.1} parent=1 // loop_footer
      %s32 = sadd.s32 1, %s28
    $region7: #{tpu_custom_call.1} parent=1 // loop_footer_branch
      %27 = sbr.rel target = $region3
    $region8: #{tpu_custom_call.1} parent=1 // loop_exit
      _
    %1437 = vsyncpa [#allocation3], 1
    %s1438 = scalar_lea.sflag [#allocation3], 1
    %1439 = vsyncpa %s1438, 1
    %1440 = vsyncpa [#allocation6], 1
    %s1441 = scalar_lea.sflag [#allocation6], 1
    %1442 = vsyncpa %s1441, 1
    %1443 = vsyncpa [#allocation9], 1
    %s1444 = scalar_lea.sflag [#allocation9], 1
    %1445 = vsyncpa %s1444, 1
    %1446 = vsyncpa [#allocation4], 1
    %s1447 = scalar_lea.sflag [#allocation4], 1
    %1448 = vsyncpa %s1447, 1

</llo_original>
